<compile_context>
chip_gen: v6e
topology: v6e:2x2x1
jax: 0.10.0
libtpu: 0.0.40
codegen_flags: <defaults>
</compile_context>

<pallas_src>
import functools

import jax
import jax.numpy as jnp
from jax import lax
from jax.experimental import pallas as pl
from jax.experimental.pallas import tpu as pltpu


# ----------------------------------------------------------------------------
# Fused kernel factory
# ----------------------------------------------------------------------------
def _make_fused_rnn_kernel(num_layers, B, B_pad, T, Vp, E, H, O):
    TB = T * B_pad

    def kernel(idx_ref, emb_ref, *args):
        # args = [wih_0, whh_0, b_0, ..., wih_{L-1}, whh_{L-1}, b_{L-1},
        #         w1, b1, w2, b2, out_ref]
        layer_refs = []
        p = 0
        for _ in range(num_layers):
            layer_refs.append((args[p], args[p + 1], args[p + 2]))
            p += 3
        w1_ref, b1_ref, w2_ref, b2_ref, out_ref = args[p:p + 5]

        # ---- Embedding gather for ALL timesteps at once (off the serial chain) --
        # Rows are t-major: row r = t*B_pad + b holds token index[b, t].
        idx = idx_ref[...]                                         # (TB, 1) int32
        iota_v = lax.broadcasted_iota(jnp.int32, (TB, Vp), 1)
        onehot = (idx == iota_v).astype(jnp.bfloat16)              # (TB, Vp)
        x_all = jnp.dot(onehot, emb_ref[...],
                        preferred_element_type=jnp.float32)        # (TB, E) f32

        h_last = None
        for l in range(num_layers):
            wih_ref, whh_ref, b_ref = layer_refs[l]

            # Batched input projection for all T steps: one 64-row-LHS matmul,
            # bias added once here (broadcast hoisted out of the time loop).
            xw = jnp.dot(x_all.astype(jnp.bfloat16), wih_ref[...],
                         preferred_element_type=jnp.float32)       # (TB, 4H)
            xw = xw + b_ref[...]                                   # (1, 4H) broadcast

            h = jnp.zeros((B_pad, H), jnp.float32)
            c = jnp.zeros((B_pad, H), jnp.float32)
            hs = []
            # Fully unrolled time sweep: only h @ W_hh is on the dependence chain.
            for t in range(T):
                gates = xw[t * B_pad:(t + 1) * B_pad, :] + jnp.dot(
                    h.astype(jnp.bfloat16), whh_ref[...],          # read inline
                    preferred_element_type=jnp.float32)            # (B_pad, 4H)
                # PyTorch gate order i, f, g, o — 32-lane static slabs.
                ig = jax.nn.sigmoid(gates[:, 0 * H:1 * H])
                fg = jax.nn.sigmoid(gates[:, 1 * H:2 * H])
                gg = jnp.tanh(gates[:, 2 * H:3 * H])
                og = jax.nn.sigmoid(gates[:, 3 * H:4 * H])
                c = fg * c + ig * gg
                h = og * jnp.tanh(c)
                hs.append(h)
            # Next layer's input (t-major rows) -> feeds the next batched projection.
            x_all = jnp.concatenate(hs, axis=0)                    # (TB, H)
            h_last = h

        # MLP head on hidden[-1]: Linear -> ReLU -> (Dropout=identity) -> Linear
        z = jnp.dot(h_last.astype(jnp.bfloat16), w1_ref[...],
                    preferred_element_type=jnp.float32) + b1_ref[...]
        z = jnp.maximum(z, 0.0)
        out = jnp.dot(z.astype(jnp.bfloat16), w2_ref[...],
                      preferred_element_type=jnp.float32) + b2_ref[...]

        # Only HBM write-back: one small (masked) store of the real (B, O) rows.
        out_ref[...] = out[:B, :].astype(out_ref.dtype)

    return kernel


def _full_spec(shape):
    nd = len(shape)
    return pl.BlockSpec(shape, lambda i, _nd=nd: (0,) * _nd)


# ----------------------------------------------------------------------------
# Forward pass: one pallas_call for the whole module
# ----------------------------------------------------------------------------
@functools.partial(jax.jit, static_argnames=("B", "B_pad"))
def rnn_forward(idx_tb, emb_p, lstm_params_p, w1_p, b1, w2_p, b2, *, B, B_pad=8):
    TB = idx_tb.shape[0]
    T = TB // B_pad
    Vp, E = emb_p.shape
    H = lstm_params_p[0][1].shape[0]          # whh: (H, 4H)
    O = w2_p.shape[1]
    num_layers = len(lstm_params_p)

    kernel = _make_fused_rnn_kernel(num_layers, B, B_pad, T, Vp, E, H, O)

    in_specs = [_full_spec((TB, 1)), _full_spec((Vp, E))]
    flat_inputs = [idx_tb, emb_p]
    for (wih, whh, b) in lstm_params_p:
        in_specs += [_full_spec(wih.shape), _full_spec(whh.shape), _full_spec(b.shape)]
        flat_inputs += [wih, whh, b]
    in_specs += [_full_spec(w1_p.shape), _full_spec(b1.shape),
                 _full_spec(w2_p.shape), _full_spec(b2.shape)]
    flat_inputs += [w1_p, b1, w2_p, b2]

    return pl.pallas_call(
        kernel,
        out_shape=jax.ShapeDtypeStruct((B, O), jnp.float32),
        grid_spec=pltpu.PrefetchScalarGridSpec(
            num_scalar_prefetch=0,
            grid=(1,),
            in_specs=in_specs,
            out_specs=_full_spec((B, O)),
        ),
        compiler_params=pltpu.CompilerParams(
            dimension_semantics=("arbitrary",),
            vmem_limit_bytes=8 * 1024 * 1024,   # total residency ~100 KiB; leave headroom
        ),
    )(*flat_inputs)


# ----------------------------------------------------------------------------
# Host-side prep: pad vocab to Vp for the aligned one-hot matmul, cast weight
# matrices to bf16 (biases stay f32), and arrange token ids t-major with the
# batch padded to B_pad sublanes (padded rows compute harmless garbage that is
# discarded by the final in-kernel slice).
# ----------------------------------------------------------------------------
def prepare_params(emb_table, lstm_params, w1, w2, Vp):
    vocab = emb_table.shape[0]
    emb_p = jnp.pad(emb_table, ((0, Vp - vocab), (0, 0))).astype(jnp.bfloat16)
    lstm_p = [(wih.astype(jnp.bfloat16), whh.astype(jnp.bfloat16), b)
              for (wih, whh, b) in lstm_params]
    return emb_p, lstm_p, w1.astype(jnp.bfloat16), w2.astype(jnp.bfloat16)


def prepare_index(index, B_pad):
    B, T = index.shape
    idx_tb = jnp.zeros((T, B_pad), jnp.int32).at[:, :B].set(index.T)
    return idx_tb.reshape(T * B_pad, 1)


# ----------------------------------------------------------------------------
# Pure-JAX reference (f32, highest precision) for a correctness check
# ----------------------------------------------------------------------------
def rnn_reference(index, emb_table, lstm_params, w1, b1, w2, b2):
    with jax.default_matmul_precision("highest"):
        x = jnp.take(emb_table, index, axis=0)          # (B, T, E)
        x = jnp.transpose(x, (1, 0, 2))                 # (T, B, E)
        B = index.shape[0]
        for (w_ih, w_hh, b) in lstm_params:
            H = w_hh.shape[0]
            h = jnp.zeros((B, H), jnp.float32)
            c = jnp.zeros((B, H), jnp.float32)
            outs = []
            for t in range(x.shape[0]):
                gates = x[t] @ w_ih + h @ w_hh + b
                i = jax.nn.sigmoid(gates[:, 0:H])
                f = jax.nn.sigmoid(gates[:, H:2 * H])
                g = jnp.tanh(gates[:, 2 * H:3 * H])
                o = jax.nn.sigmoid(gates[:, 3 * H:4 * H])
                c = f * c + i * g
                h = o * jnp.tanh(c)
                outs.append(h)
            x = jnp.stack(outs, axis=0)
        h_last = x[-1]
        z = jnp.maximum(h_last @ w1 + b1, 0.0)
        return z @ w2 + b2


if __name__ == "__main__":
    VOCAB, E, H, O, L = 50, 32, 32, 8, 2     # input_dim, embedding, hidden, output, layers
    B, T = 2, 8
    B_pad = 8                                # batch padded to one sublane tile
    Vp = 128                                 # vocab padded for the aligned one-hot matmul

    key = jax.random.PRNGKey(0)
    keys = jax.random.split(key, 4 * L + 7)

    emb_table = 0.1 * jax.random.normal(keys[0], (VOCAB, E), jnp.float32)

    scale = 1.0 / (H ** 0.5)
    lstm_params = []
    k = 1
    for layer in range(L):
        in_dim = E if layer == 0 else H
        w_ih = jax.random.uniform(keys[k], (in_dim, 4 * H), jnp.float32, -scale, scale); k += 1
        w_hh = jax.random.uniform(keys[k], (H, 4 * H), jnp.float32, -scale, scale); k += 1
        b_ih = jax.random.uniform(keys[k], (1, 4 * H), jnp.float32, -scale, scale); k += 1
        b_hh = jax.random.uniform(keys[k], (1, 4 * H), jnp.float32, -scale, scale); k += 1
        lstm_params.append((w_ih, w_hh, b_ih + b_hh))

    lscale1 = 1.0 / (H ** 0.5)
    lscale2 = 1.0 / ((2 * H) ** 0.5)
    w1 = jax.random.uniform(keys[k], (H, 2 * H), jnp.float32, -lscale1, lscale1); k += 1
    b1 = jax.random.uniform(keys[k], (1, 2 * H), jnp.float32, -lscale1, lscale1); k += 1
    w2 = jax.random.uniform(keys[k], (2 * H, O), jnp.float32, -lscale2, lscale2); k += 1
    b2 = jax.random.uniform(keys[k], (1, O), jnp.float32, -lscale2, lscale2); k += 1

    index = jax.random.randint(keys[k], (B, T), 0, VOCAB, dtype=jnp.int32)

    emb_p, lstm_params_p, w1_p, w2_p = prepare_params(emb_table, lstm_params, w1, w2, Vp)
    idx_tb = prepare_index(index, B_pad)

    out = rnn_forward(idx_tb, emb_p, lstm_params_p, w1_p, b1, w2_p, b2, B=B, B_pad=B_pad)
    jax.block_until_ready(out)
    assert out.shape == (B, O)

    ref = rnn_reference(index, emb_table, lstm_params, w1, b1, w2, b2)
    # Tolerance accounts for the (intentional) bf16 weight cast; the previous f32
    # path used default MXU precision (bf16-truncated operands) so numerics are
    # essentially unchanged, but we leave headroom vs the "highest"-precision ref.
    assert jnp.allclose(out, ref, rtol=1e-2, atol=1e-2), (out, ref)

    print("KERNEL_OK")
</pallas_src>

<mosaic_0001>
module attributes {stable_mosaic.version = 11 : i64} {
  func.func @kernel(%arg0: i32, %arg1: memref<64x1xi32, #tpu.memory_space<vmem>>, %arg2: memref<128x32xbf16, #tpu.memory_space<vmem>>, %arg3: memref<32x128xbf16, #tpu.memory_space<vmem>>, %arg4: memref<32x128xbf16, #tpu.memory_space<vmem>>, %arg5: memref<1x128xf32, #tpu.memory_space<vmem>>, %arg6: memref<32x128xbf16, #tpu.memory_space<vmem>>, %arg7: memref<32x128xbf16, #tpu.memory_space<vmem>>, %arg8: memref<1x128xf32, #tpu.memory_space<vmem>>, %arg9: memref<32x64xbf16, #tpu.memory_space<vmem>>, %arg10: memref<1x64xf32, #tpu.memory_space<vmem>>, %arg11: memref<64x8xbf16, #tpu.memory_space<vmem>>, %arg12: memref<1x8xf32, #tpu.memory_space<vmem>>, %arg13: memref<2x8xf32, #tpu.memory_space<vmem>>) attributes {dimension_semantics = [#tpu.dimension_semantics<arbitrary>], iteration_bounds = array<i64: 1>, scalar_prefetch = 0 : i64, scratch_operands = 0 : i64, tpu.core_type = #tpu.core_type<tc>, window_params = [{pipeline_mode = #tpu.pipeline_mode<synchronous>, transform_indices = @transform_0, window_bounds = array<i64: 64, 1>}, {pipeline_mode = #tpu.pipeline_mode<synchronous>, transform_indices = @transform_1, window_bounds = array<i64: 128, 32>}, {pipeline_mode = #tpu.pipeline_mode<synchronous>, transform_indices = @transform_2, window_bounds = array<i64: 32, 128>}, {pipeline_mode = #tpu.pipeline_mode<synchronous>, transform_indices = @transform_3, window_bounds = array<i64: 32, 128>}, {pipeline_mode = #tpu.pipeline_mode<synchronous>, transform_indices = @transform_4, window_bounds = array<i64: 1, 128>}, {pipeline_mode = #tpu.pipeline_mode<synchronous>, transform_indices = @transform_5, window_bounds = array<i64: 32, 128>}, {pipeline_mode = #tpu.pipeline_mode<synchronous>, transform_indices = @transform_6, window_bounds = array<i64: 32, 128>}, {pipeline_mode = #tpu.pipeline_mode<synchronous>, transform_indices = @transform_7, window_bounds = array<i64: 1, 128>}, {pipeline_mode = #tpu.pipeline_mode<synchronous>, transform_indices = @transform_8, window_bounds = array<i64: 32, 64>}, {pipeline_mode = #tpu.pipeline_mode<synchronous>, transform_indices = @transform_9, window_bounds = array<i64: 1, 64>}, {pipeline_mode = #tpu.pipeline_mode<synchronous>, transform_indices = @transform_10, window_bounds = array<i64: 64, 8>}, {pipeline_mode = #tpu.pipeline_mode<synchronous>, transform_indices = @transform_11, window_bounds = array<i64: 1, 8>}, {pipeline_mode = #tpu.pipeline_mode<synchronous>, transform_indices = @transform_12, window_bounds = array<i64: 2, 8>}]} {
    %c0 = arith.constant 0 : index
    %c0_0 = arith.constant 0 : index
    %0 = vector.load %arg1[%c0, %c0_0] : memref<64x1xi32, #tpu.memory_space<vmem>>, vector<64x1xi32>
    %1 = tpu.iota {dimensions = array<i32: 1>} : vector<64x128xi32>
    %2 = vector.broadcast %0 : vector<64x1xi32> to vector<64x128xi32>
    %3 = arith.cmpi eq, %2, %1 : vector<64x128xi32>
    %4 = arith.extui %3 : vector<64x128xi1> to vector<64x128xi32>
    %5 = arith.sitofp %4 : vector<64x128xi32> to vector<64x128xf32>
    %6 = arith.truncf %5 : vector<64x128xf32> to vector<64x128xbf16>
    %c0_1 = arith.constant 0 : index
    %c0_2 = arith.constant 0 : index
    %7 = vector.load %arg2[%c0_1, %c0_2] : memref<128x32xbf16, #tpu.memory_space<vmem>>, vector<128x32xbf16>
    %cst = arith.constant dense<0.000000e+00> : vector<64x32xf32>
    %8 = tpu.matmul %6, %7, %cst {dimension_numbers = #tpu.dot_dimension_numbers<[1], [0], [0], [1], [0, 0, 1, 1], [], []>} : vector<64x128xbf16>, vector<128x32xbf16>, vector<64x32xf32> -> vector<64x32xf32>
    %9 = arith.truncf %8 : vector<64x32xf32> to vector<64x32xbf16>
    %c0_3 = arith.constant 0 : index
    %c0_4 = arith.constant 0 : index
    %10 = vector.load %arg3[%c0_3, %c0_4] : memref<32x128xbf16, #tpu.memory_space<vmem>>, vector<32x128xbf16>
    %cst_5 = arith.constant dense<0.000000e+00> : vector<64x128xf32>
    %11 = tpu.matmul %9, %10, %cst_5 {dimension_numbers = #tpu.dot_dimension_numbers<[1], [0], [0], [1], [0, 0, 1, 1], [], []>} : vector<64x32xbf16>, vector<32x128xbf16>, vector<64x128xf32> -> vector<64x128xf32>
    %c0_6 = arith.constant 0 : index
    %c0_7 = arith.constant 0 : index
    %12 = vector.load %arg5[%c0_6, %c0_7] : memref<1x128xf32, #tpu.memory_space<vmem>>, vector<1x128xf32>
    %13 = vector.broadcast %12 : vector<1x128xf32> to vector<64x128xf32>
    %14 = arith.addf %11, %13 : vector<64x128xf32>
    %cst_8 = arith.constant 0.000000e+00 : f32
    %15 = vector.broadcast %cst_8 : f32 to vector<8x32xf32>
    %cst_9 = arith.constant 0.000000e+00 : f32
    %16 = vector.broadcast %cst_9 : f32 to vector<8x32xf32>
    %17 = vector.extract_strided_slice %14 {offsets = [0, 0], sizes = [8, 128], strides = [1, 1]} : vector<64x128xf32> to vector<8x128xf32>
    %18 = arith.truncf %15 : vector<8x32xf32> to vector<8x32xbf16>
    %c0_10 = arith.constant 0 : index
    %c0_11 = arith.constant 0 : index
    %19 = vector.load %arg4[%c0_10, %c0_11] : memref<32x128xbf16, #tpu.memory_space<vmem>>, vector<32x128xbf16>
    %cst_12 = arith.constant dense<0.000000e+00> : vector<8x128xf32>
    %20 = tpu.matmul %18, %19, %cst_12 {dimension_numbers = #tpu.dot_dimension_numbers<[1], [0], [0], [1], [0, 0, 1, 1], [], []>} : vector<8x32xbf16>, vector<32x128xbf16>, vector<8x128xf32> -> vector<8x128xf32>
    %21 = arith.addf %17, %20 : vector<8x128xf32>
    %22 = vector.extract_strided_slice %21 {offsets = [0, 0], sizes = [8, 32], strides = [1, 1]} : vector<8x128xf32> to vector<8x32xf32>
    %23 = arith.negf %22 : vector<8x32xf32>
    %24 = math.exp %23 : vector<8x32xf32>
    %cst_13 = arith.constant 1.000000e+00 : f32
    %25 = vector.broadcast %cst_13 : f32 to vector<8x32xf32>
    %26 = arith.addf %25, %24 : vector<8x32xf32>
    %27 = arith.divf %25, %26 : vector<8x32xf32>
    %28 = vector.extract_strided_slice %21 {offsets = [0, 32], sizes = [8, 32], strides = [1, 1]} : vector<8x128xf32> to vector<8x32xf32>
    %29 = arith.negf %28 : vector<8x32xf32>
    %30 = math.exp %29 : vector<8x32xf32>
    %cst_14 = arith.constant 1.000000e+00 : f32
    %31 = vector.broadcast %cst_14 : f32 to vector<8x32xf32>
    %32 = arith.addf %31, %30 : vector<8x32xf32>
    %33 = arith.divf %31, %32 : vector<8x32xf32>
    %34 = vector.extract_strided_slice %21 {offsets = [0, 64], sizes = [8, 32], strides = [1, 1]} : vector<8x128xf32> to vector<8x32xf32>
    %35 = math.tanh %34 : vector<8x32xf32>
    %36 = vector.extract_strided_slice %21 {offsets = [0, 96], sizes = [8, 32], strides = [1, 1]} : vector<8x128xf32> to vector<8x32xf32>
    %37 = arith.negf %36 : vector<8x32xf32>
    %38 = math.exp %37 : vector<8x32xf32>
    %cst_15 = arith.constant 1.000000e+00 : f32
    %39 = vector.broadcast %cst_15 : f32 to vector<8x32xf32>
    %40 = arith.addf %39, %38 : vector<8x32xf32>
    %41 = arith.divf %39, %40 : vector<8x32xf32>
    %42 = arith.mulf %33, %16 : vector<8x32xf32>
    %43 = arith.mulf %27, %35 : vector<8x32xf32>
    %44 = arith.addf %42, %43 : vector<8x32xf32>
    %45 = math.tanh %44 : vector<8x32xf32>
    %46 = arith.mulf %41, %45 : vector<8x32xf32>
    %47 = vector.extract_strided_slice %14 {offsets = [8, 0], sizes = [8, 128], strides = [1, 1]} : vector<64x128xf32> to vector<8x128xf32>
    %48 = arith.truncf %46 : vector<8x32xf32> to vector<8x32xbf16>
    %c0_16 = arith.constant 0 : index
    %c0_17 = arith.constant 0 : index
    %49 = vector.load %arg4[%c0_16, %c0_17] : memref<32x128xbf16, #tpu.memory_space<vmem>>, vector<32x128xbf16>
    %cst_18 = arith.constant dense<0.000000e+00> : vector<8x128xf32>
    %50 = tpu.matmul %48, %49, %cst_18 {dimension_numbers = #tpu.dot_dimension_numbers<[1], [0], [0], [1], [0, 0, 1, 1], [], []>} : vector<8x32xbf16>, vector<32x128xbf16>, vector<8x128xf32> -> vector<8x128xf32>
    %51 = arith.addf %47, %50 : vector<8x128xf32>
    %52 = vector.extract_strided_slice %51 {offsets = [0, 0], sizes = [8, 32], strides = [1, 1]} : vector<8x128xf32> to vector<8x32xf32>
    %53 = arith.negf %52 : vector<8x32xf32>
    %54 = math.exp %53 : vector<8x32xf32>
    %cst_19 = arith.constant 1.000000e+00 : f32
    %55 = vector.broadcast %cst_19 : f32 to vector<8x32xf32>
    %56 = arith.addf %55, %54 : vector<8x32xf32>
    %57 = arith.divf %55, %56 : vector<8x32xf32>
    %58 = vector.extract_strided_slice %51 {offsets = [0, 32], sizes = [8, 32], strides = [1, 1]} : vector<8x128xf32> to vector<8x32xf32>
    %59 = arith.negf %58 : vector<8x32xf32>
    %60 = math.exp %59 : vector<8x32xf32>
    %cst_20 = arith.constant 1.000000e+00 : f32
    %61 = vector.broadcast %cst_20 : f32 to vector<8x32xf32>
    %62 = arith.addf %61, %60 : vector<8x32xf32>
    %63 = arith.divf %61, %62 : vector<8x32xf32>
    %64 = vector.extract_strided_slice %51 {offsets = [0, 64], sizes = [8, 32], strides = [1, 1]} : vector<8x128xf32> to vector<8x32xf32>
    %65 = math.tanh %64 : vector<8x32xf32>
    %66 = vector.extract_strided_slice %51 {offsets = [0, 96], sizes = [8, 32], strides = [1, 1]} : vector<8x128xf32> to vector<8x32xf32>
    %67 = arith.negf %66 : vector<8x32xf32>
    %68 = math.exp %67 : vector<8x32xf32>
    %cst_21 = arith.constant 1.000000e+00 : f32
    %69 = vector.broadcast %cst_21 : f32 to vector<8x32xf32>
    %70 = arith.addf %69, %68 : vector<8x32xf32>
    %71 = arith.divf %69, %70 : vector<8x32xf32>
    %72 = arith.mulf %63, %44 : vector<8x32xf32>
    %73 = arith.mulf %57, %65 : vector<8x32xf32>
    %74 = arith.addf %72, %73 : vector<8x32xf32>
    %75 = math.tanh %74 : vector<8x32xf32>
    %76 = arith.mulf %71, %75 : vector<8x32xf32>
    %77 = vector.extract_strided_slice %14 {offsets = [16, 0], sizes = [8, 128], strides = [1, 1]} : vector<64x128xf32> to vector<8x128xf32>
    %78 = arith.truncf %76 : vector<8x32xf32> to vector<8x32xbf16>
    %c0_22 = arith.constant 0 : index
    %c0_23 = arith.constant 0 : index
    %79 = vector.load %arg4[%c0_22, %c0_23] : memref<32x128xbf16, #tpu.memory_space<vmem>>, vector<32x128xbf16>
    %cst_24 = arith.constant dense<0.000000e+00> : vector<8x128xf32>
    %80 = tpu.matmul %78, %79, %cst_24 {dimension_numbers = #tpu.dot_dimension_numbers<[1], [0], [0], [1], [0, 0, 1, 1], [], []>} : vector<8x32xbf16>, vector<32x128xbf16>, vector<8x128xf32> -> vector<8x128xf32>
    %81 = arith.addf %77, %80 : vector<8x128xf32>
    %82 = vector.extract_strided_slice %81 {offsets = [0, 0], sizes = [8, 32], strides = [1, 1]} : vector<8x128xf32> to vector<8x32xf32>
    %83 = arith.negf %82 : vector<8x32xf32>
    %84 = math.exp %83 : vector<8x32xf32>
    %cst_25 = arith.constant 1.000000e+00 : f32
    %85 = vector.broadcast %cst_25 : f32 to vector<8x32xf32>
    %86 = arith.addf %85, %84 : vector<8x32xf32>
    %87 = arith.divf %85, %86 : vector<8x32xf32>
    %88 = vector.extract_strided_slice %81 {offsets = [0, 32], sizes = [8, 32], strides = [1, 1]} : vector<8x128xf32> to vector<8x32xf32>
    %89 = arith.negf %88 : vector<8x32xf32>
    %90 = math.exp %89 : vector<8x32xf32>
    %cst_26 = arith.constant 1.000000e+00 : f32
    %91 = vector.broadcast %cst_26 : f32 to vector<8x32xf32>
    %92 = arith.addf %91, %90 : vector<8x32xf32>
    %93 = arith.divf %91, %92 : vector<8x32xf32>
    %94 = vector.extract_strided_slice %81 {offsets = [0, 64], sizes = [8, 32], strides = [1, 1]} : vector<8x128xf32> to vector<8x32xf32>
    %95 = math.tanh %94 : vector<8x32xf32>
    %96 = vector.extract_strided_slice %81 {offsets = [0, 96], sizes = [8, 32], strides = [1, 1]} : vector<8x128xf32> to vector<8x32xf32>
    %97 = arith.negf %96 : vector<8x32xf32>
    %98 = math.exp %97 : vector<8x32xf32>
    %cst_27 = arith.constant 1.000000e+00 : f32
    %99 = vector.broadcast %cst_27 : f32 to vector<8x32xf32>
    %100 = arith.addf %99, %98 : vector<8x32xf32>
    %101 = arith.divf %99, %100 : vector<8x32xf32>
    %102 = arith.mulf %93, %74 : vector<8x32xf32>
    %103 = arith.mulf %87, %95 : vector<8x32xf32>
    %104 = arith.addf %102, %103 : vector<8x32xf32>
    %105 = math.tanh %104 : vector<8x32xf32>
    %106 = arith.mulf %101, %105 : vector<8x32xf32>
    %107 = vector.extract_strided_slice %14 {offsets = [24, 0], sizes = [8, 128], strides = [1, 1]} : vector<64x128xf32> to vector<8x128xf32>
    %108 = arith.truncf %106 : vector<8x32xf32> to vector<8x32xbf16>
    %c0_28 = arith.constant 0 : index
    %c0_29 = arith.constant 0 : index
    %109 = vector.load %arg4[%c0_28, %c0_29] : memref<32x128xbf16, #tpu.memory_space<vmem>>, vector<32x128xbf16>
    %cst_30 = arith.constant dense<0.000000e+00> : vector<8x128xf32>
    %110 = tpu.matmul %108, %109, %cst_30 {dimension_numbers = #tpu.dot_dimension_numbers<[1], [0], [0], [1], [0, 0, 1, 1], [], []>} : vector<8x32xbf16>, vector<32x128xbf16>, vector<8x128xf32> -> vector<8x128xf32>
    %111 = arith.addf %107, %110 : vector<8x128xf32>
    %112 = vector.extract_strided_slice %111 {offsets = [0, 0], sizes = [8, 32], strides = [1, 1]} : vector<8x128xf32> to vector<8x32xf32>
    %113 = arith.negf %112 : vector<8x32xf32>
    %114 = math.exp %113 : vector<8x32xf32>
    %cst_31 = arith.constant 1.000000e+00 : f32
    %115 = vector.broadcast %cst_31 : f32 to vector<8x32xf32>
    %116 = arith.addf %115, %114 : vector<8x32xf32>
    %117 = arith.divf %115, %116 : vector<8x32xf32>
    %118 = vector.extract_strided_slice %111 {offsets = [0, 32], sizes = [8, 32], strides = [1, 1]} : vector<8x128xf32> to vector<8x32xf32>
    %119 = arith.negf %118 : vector<8x32xf32>
    %120 = math.exp %119 : vector<8x32xf32>
    %cst_32 = arith.constant 1.000000e+00 : f32
    %121 = vector.broadcast %cst_32 : f32 to vector<8x32xf32>
    %122 = arith.addf %121, %120 : vector<8x32xf32>
    %123 = arith.divf %121, %122 : vector<8x32xf32>
    %124 = vector.extract_strided_slice %111 {offsets = [0, 64], sizes = [8, 32], strides = [1, 1]} : vector<8x128xf32> to vector<8x32xf32>
    %125 = math.tanh %124 : vector<8x32xf32>
    %126 = vector.extract_strided_slice %111 {offsets = [0, 96], sizes = [8, 32], strides = [1, 1]} : vector<8x128xf32> to vector<8x32xf32>
    %127 = arith.negf %126 : vector<8x32xf32>
    %128 = math.exp %127 : vector<8x32xf32>
    %cst_33 = arith.constant 1.000000e+00 : f32
    %129 = vector.broadcast %cst_33 : f32 to vector<8x32xf32>
    %130 = arith.addf %129, %128 : vector<8x32xf32>
    %131 = arith.divf %129, %130 : vector<8x32xf32>
    %132 = arith.mulf %123, %104 : vector<8x32xf32>
    %133 = arith.mulf %117, %125 : vector<8x32xf32>
    %134 = arith.addf %132, %133 : vector<8x32xf32>
    %135 = math.tanh %134 : vector<8x32xf32>
    %136 = arith.mulf %131, %135 : vector<8x32xf32>
    %137 = vector.extract_strided_slice %14 {offsets = [32, 0], sizes = [8, 128], strides = [1, 1]} : vector<64x128xf32> to vector<8x128xf32>
    %138 = arith.truncf %136 : vector<8x32xf32> to vector<8x32xbf16>
    %c0_34 = arith.constant 0 : index
    %c0_35 = arith.constant 0 : index
    %139 = vector.load %arg4[%c0_34, %c0_35] : memref<32x128xbf16, #tpu.memory_space<vmem>>, vector<32x128xbf16>
    %cst_36 = arith.constant dense<0.000000e+00> : vector<8x128xf32>
    %140 = tpu.matmul %138, %139, %cst_36 {dimension_numbers = #tpu.dot_dimension_numbers<[1], [0], [0], [1], [0, 0, 1, 1], [], []>} : vector<8x32xbf16>, vector<32x128xbf16>, vector<8x128xf32> -> vector<8x128xf32>
    %141 = arith.addf %137, %140 : vector<8x128xf32>
    %142 = vector.extract_strided_slice %141 {offsets = [0, 0], sizes = [8, 32], strides = [1, 1]} : vector<8x128xf32> to vector<8x32xf32>
    %143 = arith.negf %142 : vector<8x32xf32>
    %144 = math.exp %143 : vector<8x32xf32>
    %cst_37 = arith.constant 1.000000e+00 : f32
    %145 = vector.broadcast %cst_37 : f32 to vector<8x32xf32>
    %146 = arith.addf %145, %144 : vector<8x32xf32>
    %147 = arith.divf %145, %146 : vector<8x32xf32>
    %148 = vector.extract_strided_slice %141 {offsets = [0, 32], sizes = [8, 32], strides = [1, 1]} : vector<8x128xf32> to vector<8x32xf32>
    %149 = arith.negf %148 : vector<8x32xf32>
    %150 = math.exp %149 : vector<8x32xf32>
    %cst_38 = arith.constant 1.000000e+00 : f32
    %151 = vector.broadcast %cst_38 : f32 to vector<8x32xf32>
    %152 = arith.addf %151, %150 : vector<8x32xf32>
    %153 = arith.divf %151, %152 : vector<8x32xf32>
    %154 = vector.extract_strided_slice %141 {offsets = [0, 64], sizes = [8, 32], strides = [1, 1]} : vector<8x128xf32> to vector<8x32xf32>
    %155 = math.tanh %154 : vector<8x32xf32>
    %156 = vector.extract_strided_slice %141 {offsets = [0, 96], sizes = [8, 32], strides = [1, 1]} : vector<8x128xf32> to vector<8x32xf32>
    %157 = arith.negf %156 : vector<8x32xf32>
    %158 = math.exp %157 : vector<8x32xf32>
    %cst_39 = arith.constant 1.000000e+00 : f32
    %159 = vector.broadcast %cst_39 : f32 to vector<8x32xf32>
    %160 = arith.addf %159, %158 : vector<8x32xf32>
    %161 = arith.divf %159, %160 : vector<8x32xf32>
    %162 = arith.mulf %153, %134 : vector<8x32xf32>
    %163 = arith.mulf %147, %155 : vector<8x32xf32>
    %164 = arith.addf %162, %163 : vector<8x32xf32>
    %165 = math.tanh %164 : vector<8x32xf32>
    %166 = arith.mulf %161, %165 : vector<8x32xf32>
    %167 = vector.extract_strided_slice %14 {offsets = [40, 0], sizes = [8, 128], strides = [1, 1]} : vector<64x128xf32> to vector<8x128xf32>
    %168 = arith.truncf %166 : vector<8x32xf32> to vector<8x32xbf16>
    %c0_40 = arith.constant 0 : index
    %c0_41 = arith.constant 0 : index
    %169 = vector.load %arg4[%c0_40, %c0_41] : memref<32x128xbf16, #tpu.memory_space<vmem>>, vector<32x128xbf16>
    %cst_42 = arith.constant dense<0.000000e+00> : vector<8x128xf32>
    %170 = tpu.matmul %168, %169, %cst_42 {dimension_numbers = #tpu.dot_dimension_numbers<[1], [0], [0], [1], [0, 0, 1, 1], [], []>} : vector<8x32xbf16>, vector<32x128xbf16>, vector<8x128xf32> -> vector<8x128xf32>
    %171 = arith.addf %167, %170 : vector<8x128xf32>
    %172 = vector.extract_strided_slice %171 {offsets = [0, 0], sizes = [8, 32], strides = [1, 1]} : vector<8x128xf32> to vector<8x32xf32>
    %173 = arith.negf %172 : vector<8x32xf32>
    %174 = math.exp %173 : vector<8x32xf32>
    %cst_43 = arith.constant 1.000000e+00 : f32
    %175 = vector.broadcast %cst_43 : f32 to vector<8x32xf32>
    %176 = arith.addf %175, %174 : vector<8x32xf32>
    %177 = arith.divf %175, %176 : vector<8x32xf32>
    %178 = vector.extract_strided_slice %171 {offsets = [0, 32], sizes = [8, 32], strides = [1, 1]} : vector<8x128xf32> to vector<8x32xf32>
    %179 = arith.negf %178 : vector<8x32xf32>
    %180 = math.exp %179 : vector<8x32xf32>
    %cst_44 = arith.constant 1.000000e+00 : f32
    %181 = vector.broadcast %cst_44 : f32 to vector<8x32xf32>
    %182 = arith.addf %181, %180 : vector<8x32xf32>
    %183 = arith.divf %181, %182 : vector<8x32xf32>
    %184 = vector.extract_strided_slice %171 {offsets = [0, 64], sizes = [8, 32], strides = [1, 1]} : vector<8x128xf32> to vector<8x32xf32>
    %185 = math.tanh %184 : vector<8x32xf32>
    %186 = vector.extract_strided_slice %171 {offsets = [0, 96], sizes = [8, 32], strides = [1, 1]} : vector<8x128xf32> to vector<8x32xf32>
    %187 = arith.negf %186 : vector<8x32xf32>
    %188 = math.exp %187 : vector<8x32xf32>
    %cst_45 = arith.constant 1.000000e+00 : f32
    %189 = vector.broadcast %cst_45 : f32 to vector<8x32xf32>
    %190 = arith.addf %189, %188 : vector<8x32xf32>
    %191 = arith.divf %189, %190 : vector<8x32xf32>
    %192 = arith.mulf %183, %164 : vector<8x32xf32>
    %193 = arith.mulf %177, %185 : vector<8x32xf32>
    %194 = arith.addf %192, %193 : vector<8x32xf32>
    %195 = math.tanh %194 : vector<8x32xf32>
    %196 = arith.mulf %191, %195 : vector<8x32xf32>
    %197 = vector.extract_strided_slice %14 {offsets = [48, 0], sizes = [8, 128], strides = [1, 1]} : vector<64x128xf32> to vector<8x128xf32>
    %198 = arith.truncf %196 : vector<8x32xf32> to vector<8x32xbf16>
    %c0_46 = arith.constant 0 : index
    %c0_47 = arith.constant 0 : index
    %199 = vector.load %arg4[%c0_46, %c0_47] : memref<32x128xbf16, #tpu.memory_space<vmem>>, vector<32x128xbf16>
    %cst_48 = arith.constant dense<0.000000e+00> : vector<8x128xf32>
    %200 = tpu.matmul %198, %199, %cst_48 {dimension_numbers = #tpu.dot_dimension_numbers<[1], [0], [0], [1], [0, 0, 1, 1], [], []>} : vector<8x32xbf16>, vector<32x128xbf16>, vector<8x128xf32> -> vector<8x128xf32>
    %201 = arith.addf %197, %200 : vector<8x128xf32>
    %202 = vector.extract_strided_slice %201 {offsets = [0, 0], sizes = [8, 32], strides = [1, 1]} : vector<8x128xf32> to vector<8x32xf32>
    %203 = arith.negf %202 : vector<8x32xf32>
    %204 = math.exp %203 : vector<8x32xf32>
    %cst_49 = arith.constant 1.000000e+00 : f32
    %205 = vector.broadcast %cst_49 : f32 to vector<8x32xf32>
    %206 = arith.addf %205, %204 : vector<8x32xf32>
    %207 = arith.divf %205, %206 : vector<8x32xf32>
    %208 = vector.extract_strided_slice %201 {offsets = [0, 32], sizes = [8, 32], strides = [1, 1]} : vector<8x128xf32> to vector<8x32xf32>
    %209 = arith.negf %208 : vector<8x32xf32>
    %210 = math.exp %209 : vector<8x32xf32>
    %cst_50 = arith.constant 1.000000e+00 : f32
    %211 = vector.broadcast %cst_50 : f32 to vector<8x32xf32>
    %212 = arith.addf %211, %210 : vector<8x32xf32>
    %213 = arith.divf %211, %212 : vector<8x32xf32>
    %214 = vector.extract_strided_slice %201 {offsets = [0, 64], sizes = [8, 32], strides = [1, 1]} : vector<8x128xf32> to vector<8x32xf32>
    %215 = math.tanh %214 : vector<8x32xf32>
    %216 = vector.extract_strided_slice %201 {offsets = [0, 96], sizes = [8, 32], strides = [1, 1]} : vector<8x128xf32> to vector<8x32xf32>
    %217 = arith.negf %216 : vector<8x32xf32>
    %218 = math.exp %217 : vector<8x32xf32>
    %cst_51 = arith.constant 1.000000e+00 : f32
    %219 = vector.broadcast %cst_51 : f32 to vector<8x32xf32>
    %220 = arith.addf %219, %218 : vector<8x32xf32>
    %221 = arith.divf %219, %220 : vector<8x32xf32>
    %222 = arith.mulf %213, %194 : vector<8x32xf32>
    %223 = arith.mulf %207, %215 : vector<8x32xf32>
    %224 = arith.addf %222, %223 : vector<8x32xf32>
    %225 = math.tanh %224 : vector<8x32xf32>
    %226 = arith.mulf %221, %225 : vector<8x32xf32>
    %227 = vector.extract_strided_slice %14 {offsets = [56, 0], sizes = [8, 128], strides = [1, 1]} : vector<64x128xf32> to vector<8x128xf32>
    %228 = arith.truncf %226 : vector<8x32xf32> to vector<8x32xbf16>
    %c0_52 = arith.constant 0 : index
    %c0_53 = arith.constant 0 : index
    %229 = vector.load %arg4[%c0_52, %c0_53] : memref<32x128xbf16, #tpu.memory_space<vmem>>, vector<32x128xbf16>
    %cst_54 = arith.constant dense<0.000000e+00> : vector<8x128xf32>
    %230 = tpu.matmul %228, %229, %cst_54 {dimension_numbers = #tpu.dot_dimension_numbers<[1], [0], [0], [1], [0, 0, 1, 1], [], []>} : vector<8x32xbf16>, vector<32x128xbf16>, vector<8x128xf32> -> vector<8x128xf32>
    %231 = arith.addf %227, %230 : vector<8x128xf32>
    %232 = vector.extract_strided_slice %231 {offsets = [0, 0], sizes = [8, 32], strides = [1, 1]} : vector<8x128xf32> to vector<8x32xf32>
    %233 = arith.negf %232 : vector<8x32xf32>
    %234 = math.exp %233 : vector<8x32xf32>
    %cst_55 = arith.constant 1.000000e+00 : f32
    %235 = vector.broadcast %cst_55 : f32 to vector<8x32xf32>
    %236 = arith.addf %235, %234 : vector<8x32xf32>
    %237 = arith.divf %235, %236 : vector<8x32xf32>
    %238 = vector.extract_strided_slice %231 {offsets = [0, 32], sizes = [8, 32], strides = [1, 1]} : vector<8x128xf32> to vector<8x32xf32>
    %239 = arith.negf %238 : vector<8x32xf32>
    %240 = math.exp %239 : vector<8x32xf32>
    %cst_56 = arith.constant 1.000000e+00 : f32
    %241 = vector.broadcast %cst_56 : f32 to vector<8x32xf32>
    %242 = arith.addf %241, %240 : vector<8x32xf32>
    %243 = arith.divf %241, %242 : vector<8x32xf32>
    %244 = vector.extract_strided_slice %231 {offsets = [0, 64], sizes = [8, 32], strides = [1, 1]} : vector<8x128xf32> to vector<8x32xf32>
    %245 = math.tanh %244 : vector<8x32xf32>
    %246 = vector.extract_strided_slice %231 {offsets = [0, 96], sizes = [8, 32], strides = [1, 1]} : vector<8x128xf32> to vector<8x32xf32>
    %247 = arith.negf %246 : vector<8x32xf32>
    %248 = math.exp %247 : vector<8x32xf32>
    %cst_57 = arith.constant 1.000000e+00 : f32
    %249 = vector.broadcast %cst_57 : f32 to vector<8x32xf32>
    %250 = arith.addf %249, %248 : vector<8x32xf32>
    %251 = arith.divf %249, %250 : vector<8x32xf32>
    %252 = arith.mulf %243, %224 : vector<8x32xf32>
    %253 = arith.mulf %237, %245 : vector<8x32xf32>
    %254 = arith.addf %252, %253 : vector<8x32xf32>
    %255 = math.tanh %254 : vector<8x32xf32>
    %256 = arith.mulf %251, %255 : vector<8x32xf32>
    %257 = tpu.concatenate %46, %76, %106, %136, %166, %196, %226, %256 in 0 : vector<8x32xf32>, vector<8x32xf32>, vector<8x32xf32>, vector<8x32xf32>, vector<8x32xf32>, vector<8x32xf32>, vector<8x32xf32>, vector<8x32xf32> -> vector<64x32xf32>
    %258 = arith.truncf %257 : vector<64x32xf32> to vector<64x32xbf16>
    %c0_58 = arith.constant 0 : index
    %c0_59 = arith.constant 0 : index
    %259 = vector.load %arg6[%c0_58, %c0_59] : memref<32x128xbf16, #tpu.memory_space<vmem>>, vector<32x128xbf16>
    %cst_60 = arith.constant dense<0.000000e+00> : vector<64x128xf32>
    %260 = tpu.matmul %258, %259, %cst_60 {dimension_numbers = #tpu.dot_dimension_numbers<[1], [0], [0], [1], [0, 0, 1, 1], [], []>} : vector<64x32xbf16>, vector<32x128xbf16>, vector<64x128xf32> -> vector<64x128xf32>
    %c0_61 = arith.constant 0 : index
    %c0_62 = arith.constant 0 : index
    %261 = vector.load %arg8[%c0_61, %c0_62] : memref<1x128xf32, #tpu.memory_space<vmem>>, vector<1x128xf32>
    %262 = vector.broadcast %261 : vector<1x128xf32> to vector<64x128xf32>
    %263 = arith.addf %260, %262 : vector<64x128xf32>
    %cst_63 = arith.constant 0.000000e+00 : f32
    %264 = vector.broadcast %cst_63 : f32 to vector<8x32xf32>
    %cst_64 = arith.constant 0.000000e+00 : f32
    %265 = vector.broadcast %cst_64 : f32 to vector<8x32xf32>
    %266 = vector.extract_strided_slice %263 {offsets = [0, 0], sizes = [8, 128], strides = [1, 1]} : vector<64x128xf32> to vector<8x128xf32>
    %267 = arith.truncf %264 : vector<8x32xf32> to vector<8x32xbf16>
    %c0_65 = arith.constant 0 : index
    %c0_66 = arith.constant 0 : index
    %268 = vector.load %arg7[%c0_65, %c0_66] : memref<32x128xbf16, #tpu.memory_space<vmem>>, vector<32x128xbf16>
    %cst_67 = arith.constant dense<0.000000e+00> : vector<8x128xf32>
    %269 = tpu.matmul %267, %268, %cst_67 {dimension_numbers = #tpu.dot_dimension_numbers<[1], [0], [0], [1], [0, 0, 1, 1], [], []>} : vector<8x32xbf16>, vector<32x128xbf16>, vector<8x128xf32> -> vector<8x128xf32>
    %270 = arith.addf %266, %269 : vector<8x128xf32>
    %271 = vector.extract_strided_slice %270 {offsets = [0, 0], sizes = [8, 32], strides = [1, 1]} : vector<8x128xf32> to vector<8x32xf32>
    %272 = arith.negf %271 : vector<8x32xf32>
    %273 = math.exp %272 : vector<8x32xf32>
    %cst_68 = arith.constant 1.000000e+00 : f32
    %274 = vector.broadcast %cst_68 : f32 to vector<8x32xf32>
    %275 = arith.addf %274, %273 : vector<8x32xf32>
    %276 = arith.divf %274, %275 : vector<8x32xf32>
    %277 = vector.extract_strided_slice %270 {offsets = [0, 32], sizes = [8, 32], strides = [1, 1]} : vector<8x128xf32> to vector<8x32xf32>
    %278 = arith.negf %277 : vector<8x32xf32>
    %279 = math.exp %278 : vector<8x32xf32>
    %cst_69 = arith.constant 1.000000e+00 : f32
    %280 = vector.broadcast %cst_69 : f32 to vector<8x32xf32>
    %281 = arith.addf %280, %279 : vector<8x32xf32>
    %282 = arith.divf %280, %281 : vector<8x32xf32>
    %283 = vector.extract_strided_slice %270 {offsets = [0, 64], sizes = [8, 32], strides = [1, 1]} : vector<8x128xf32> to vector<8x32xf32>
    %284 = math.tanh %283 : vector<8x32xf32>
    %285 = vector.extract_strided_slice %270 {offsets = [0, 96], sizes = [8, 32], strides = [1, 1]} : vector<8x128xf32> to vector<8x32xf32>
    %286 = arith.negf %285 : vector<8x32xf32>
    %287 = math.exp %286 : vector<8x32xf32>
    %cst_70 = arith.constant 1.000000e+00 : f32
    %288 = vector.broadcast %cst_70 : f32 to vector<8x32xf32>
    %289 = arith.addf %288, %287 : vector<8x32xf32>
    %290 = arith.divf %288, %289 : vector<8x32xf32>
    %291 = arith.mulf %282, %265 : vector<8x32xf32>
    %292 = arith.mulf %276, %284 : vector<8x32xf32>
    %293 = arith.addf %291, %292 : vector<8x32xf32>
    %294 = math.tanh %293 : vector<8x32xf32>
    %295 = arith.mulf %290, %294 : vector<8x32xf32>
    %296 = vector.extract_strided_slice %263 {offsets = [8, 0], sizes = [8, 128], strides = [1, 1]} : vector<64x128xf32> to vector<8x128xf32>
    %297 = arith.truncf %295 : vector<8x32xf32> to vector<8x32xbf16>
    %c0_71 = arith.constant 0 : index
    %c0_72 = arith.constant 0 : index
    %298 = vector.load %arg7[%c0_71, %c0_72] : memref<32x128xbf16, #tpu.memory_space<vmem>>, vector<32x128xbf16>
    %cst_73 = arith.constant dense<0.000000e+00> : vector<8x128xf32>
    %299 = tpu.matmul %297, %298, %cst_73 {dimension_numbers = #tpu.dot_dimension_numbers<[1], [0], [0], [1], [0, 0, 1, 1], [], []>} : vector<8x32xbf16>, vector<32x128xbf16>, vector<8x128xf32> -> vector<8x128xf32>
    %300 = arith.addf %296, %299 : vector<8x128xf32>
    %301 = vector.extract_strided_slice %300 {offsets = [0, 0], sizes = [8, 32], strides = [1, 1]} : vector<8x128xf32> to vector<8x32xf32>
    %302 = arith.negf %301 : vector<8x32xf32>
    %303 = math.exp %302 : vector<8x32xf32>
    %cst_74 = arith.constant 1.000000e+00 : f32
    %304 = vector.broadcast %cst_74 : f32 to vector<8x32xf32>
    %305 = arith.addf %304, %303 : vector<8x32xf32>
    %306 = arith.divf %304, %305 : vector<8x32xf32>
    %307 = vector.extract_strided_slice %300 {offsets = [0, 32], sizes = [8, 32], strides = [1, 1]} : vector<8x128xf32> to vector<8x32xf32>
    %308 = arith.negf %307 : vector<8x32xf32>
    %309 = math.exp %308 : vector<8x32xf32>
    %cst_75 = arith.constant 1.000000e+00 : f32
    %310 = vector.broadcast %cst_75 : f32 to vector<8x32xf32>
    %311 = arith.addf %310, %309 : vector<8x32xf32>
    %312 = arith.divf %310, %311 : vector<8x32xf32>
    %313 = vector.extract_strided_slice %300 {offsets = [0, 64], sizes = [8, 32], strides = [1, 1]} : vector<8x128xf32> to vector<8x32xf32>
    %314 = math.tanh %313 : vector<8x32xf32>
    %315 = vector.extract_strided_slice %300 {offsets = [0, 96], sizes = [8, 32], strides = [1, 1]} : vector<8x128xf32> to vector<8x32xf32>
    %316 = arith.negf %315 : vector<8x32xf32>
    %317 = math.exp %316 : vector<8x32xf32>
    %cst_76 = arith.constant 1.000000e+00 : f32
    %318 = vector.broadcast %cst_76 : f32 to vector<8x32xf32>
    %319 = arith.addf %318, %317 : vector<8x32xf32>
    %320 = arith.divf %318, %319 : vector<8x32xf32>
    %321 = arith.mulf %312, %293 : vector<8x32xf32>
    %322 = arith.mulf %306, %314 : vector<8x32xf32>
    %323 = arith.addf %321, %322 : vector<8x32xf32>
    %324 = math.tanh %323 : vector<8x32xf32>
    %325 = arith.mulf %320, %324 : vector<8x32xf32>
    %326 = vector.extract_strided_slice %263 {offsets = [16, 0], sizes = [8, 128], strides = [1, 1]} : vector<64x128xf32> to vector<8x128xf32>
    %327 = arith.truncf %325 : vector<8x32xf32> to vector<8x32xbf16>
    %c0_77 = arith.constant 0 : index
    %c0_78 = arith.constant 0 : index
    %328 = vector.load %arg7[%c0_77, %c0_78] : memref<32x128xbf16, #tpu.memory_space<vmem>>, vector<32x128xbf16>
    %cst_79 = arith.constant dense<0.000000e+00> : vector<8x128xf32>
    %329 = tpu.matmul %327, %328, %cst_79 {dimension_numbers = #tpu.dot_dimension_numbers<[1], [0], [0], [1], [0, 0, 1, 1], [], []>} : vector<8x32xbf16>, vector<32x128xbf16>, vector<8x128xf32> -> vector<8x128xf32>
    %330 = arith.addf %326, %329 : vector<8x128xf32>
    %331 = vector.extract_strided_slice %330 {offsets = [0, 0], sizes = [8, 32], strides = [1, 1]} : vector<8x128xf32> to vector<8x32xf32>
    %332 = arith.negf %331 : vector<8x32xf32>
    %333 = math.exp %332 : vector<8x32xf32>
    %cst_80 = arith.constant 1.000000e+00 : f32
    %334 = vector.broadcast %cst_80 : f32 to vector<8x32xf32>
    %335 = arith.addf %334, %333 : vector<8x32xf32>
    %336 = arith.divf %334, %335 : vector<8x32xf32>
    %337 = vector.extract_strided_slice %330 {offsets = [0, 32], sizes = [8, 32], strides = [1, 1]} : vector<8x128xf32> to vector<8x32xf32>
    %338 = arith.negf %337 : vector<8x32xf32>
    %339 = math.exp %338 : vector<8x32xf32>
    %cst_81 = arith.constant 1.000000e+00 : f32
    %340 = vector.broadcast %cst_81 : f32 to vector<8x32xf32>
    %341 = arith.addf %340, %339 : vector<8x32xf32>
    %342 = arith.divf %340, %341 : vector<8x32xf32>
    %343 = vector.extract_strided_slice %330 {offsets = [0, 64], sizes = [8, 32], strides = [1, 1]} : vector<8x128xf32> to vector<8x32xf32>
    %344 = math.tanh %343 : vector<8x32xf32>
    %345 = vector.extract_strided_slice %330 {offsets = [0, 96], sizes = [8, 32], strides = [1, 1]} : vector<8x128xf32> to vector<8x32xf32>
    %346 = arith.negf %345 : vector<8x32xf32>
    %347 = math.exp %346 : vector<8x32xf32>
    %cst_82 = arith.constant 1.000000e+00 : f32
    %348 = vector.broadcast %cst_82 : f32 to vector<8x32xf32>
    %349 = arith.addf %348, %347 : vector<8x32xf32>
    %350 = arith.divf %348, %349 : vector<8x32xf32>
    %351 = arith.mulf %342, %323 : vector<8x32xf32>
    %352 = arith.mulf %336, %344 : vector<8x32xf32>
    %353 = arith.addf %351, %352 : vector<8x32xf32>
    %354 = math.tanh %353 : vector<8x32xf32>
    %355 = arith.mulf %350, %354 : vector<8x32xf32>
    %356 = vector.extract_strided_slice %263 {offsets = [24, 0], sizes = [8, 128], strides = [1, 1]} : vector<64x128xf32> to vector<8x128xf32>
    %357 = arith.truncf %355 : vector<8x32xf32> to vector<8x32xbf16>
    %c0_83 = arith.constant 0 : index
    %c0_84 = arith.constant 0 : index
    %358 = vector.load %arg7[%c0_83, %c0_84] : memref<32x128xbf16, #tpu.memory_space<vmem>>, vector<32x128xbf16>
    %cst_85 = arith.constant dense<0.000000e+00> : vector<8x128xf32>
    %359 = tpu.matmul %357, %358, %cst_85 {dimension_numbers = #tpu.dot_dimension_numbers<[1], [0], [0], [1], [0, 0, 1, 1], [], []>} : vector<8x32xbf16>, vector<32x128xbf16>, vector<8x128xf32> -> vector<8x128xf32>
    %360 = arith.addf %356, %359 : vector<8x128xf32>
    %361 = vector.extract_strided_slice %360 {offsets = [0, 0], sizes = [8, 32], strides = [1, 1]} : vector<8x128xf32> to vector<8x32xf32>
    %362 = arith.negf %361 : vector<8x32xf32>
    %363 = math.exp %362 : vector<8x32xf32>
    %cst_86 = arith.constant 1.000000e+00 : f32
    %364 = vector.broadcast %cst_86 : f32 to vector<8x32xf32>
    %365 = arith.addf %364, %363 : vector<8x32xf32>
    %366 = arith.divf %364, %365 : vector<8x32xf32>
    %367 = vector.extract_strided_slice %360 {offsets = [0, 32], sizes = [8, 32], strides = [1, 1]} : vector<8x128xf32> to vector<8x32xf32>
    %368 = arith.negf %367 : vector<8x32xf32>
    %369 = math.exp %368 : vector<8x32xf32>
    %cst_87 = arith.constant 1.000000e+00 : f32
    %370 = vector.broadcast %cst_87 : f32 to vector<8x32xf32>
    %371 = arith.addf %370, %369 : vector<8x32xf32>
    %372 = arith.divf %370, %371 : vector<8x32xf32>
    %373 = vector.extract_strided_slice %360 {offsets = [0, 64], sizes = [8, 32], strides = [1, 1]} : vector<8x128xf32> to vector<8x32xf32>
    %374 = math.tanh %373 : vector<8x32xf32>
    %375 = vector.extract_strided_slice %360 {offsets = [0, 96], sizes = [8, 32], strides = [1, 1]} : vector<8x128xf32> to vector<8x32xf32>
    %376 = arith.negf %375 : vector<8x32xf32>
    %377 = math.exp %376 : vector<8x32xf32>
    %cst_88 = arith.constant 1.000000e+00 : f32
    %378 = vector.broadcast %cst_88 : f32 to vector<8x32xf32>
    %379 = arith.addf %378, %377 : vector<8x32xf32>
    %380 = arith.divf %378, %379 : vector<8x32xf32>
    %381 = arith.mulf %372, %353 : vector<8x32xf32>
    %382 = arith.mulf %366, %374 : vector<8x32xf32>
    %383 = arith.addf %381, %382 : vector<8x32xf32>
    %384 = math.tanh %383 : vector<8x32xf32>
    %385 = arith.mulf %380, %384 : vector<8x32xf32>
    %386 = vector.extract_strided_slice %263 {offsets = [32, 0], sizes = [8, 128], strides = [1, 1]} : vector<64x128xf32> to vector<8x128xf32>
    %387 = arith.truncf %385 : vector<8x32xf32> to vector<8x32xbf16>
    %c0_89 = arith.constant 0 : index
    %c0_90 = arith.constant 0 : index
    %388 = vector.load %arg7[%c0_89, %c0_90] : memref<32x128xbf16, #tpu.memory_space<vmem>>, vector<32x128xbf16>
    %cst_91 = arith.constant dense<0.000000e+00> : vector<8x128xf32>
    %389 = tpu.matmul %387, %388, %cst_91 {dimension_numbers = #tpu.dot_dimension_numbers<[1], [0], [0], [1], [0, 0, 1, 1], [], []>} : vector<8x32xbf16>, vector<32x128xbf16>, vector<8x128xf32> -> vector<8x128xf32>
    %390 = arith.addf %386, %389 : vector<8x128xf32>
    %391 = vector.extract_strided_slice %390 {offsets = [0, 0], sizes = [8, 32], strides = [1, 1]} : vector<8x128xf32> to vector<8x32xf32>
    %392 = arith.negf %391 : vector<8x32xf32>
    %393 = math.exp %392 : vector<8x32xf32>
    %cst_92 = arith.constant 1.000000e+00 : f32
    %394 = vector.broadcast %cst_92 : f32 to vector<8x32xf32>
    %395 = arith.addf %394, %393 : vector<8x32xf32>
    %396 = arith.divf %394, %395 : vector<8x32xf32>
    %397 = vector.extract_strided_slice %390 {offsets = [0, 32], sizes = [8, 32], strides = [1, 1]} : vector<8x128xf32> to vector<8x32xf32>
    %398 = arith.negf %397 : vector<8x32xf32>
    %399 = math.exp %398 : vector<8x32xf32>
    %cst_93 = arith.constant 1.000000e+00 : f32
    %400 = vector.broadcast %cst_93 : f32 to vector<8x32xf32>
    %401 = arith.addf %400, %399 : vector<8x32xf32>
    %402 = arith.divf %400, %401 : vector<8x32xf32>
    %403 = vector.extract_strided_slice %390 {offsets = [0, 64], sizes = [8, 32], strides = [1, 1]} : vector<8x128xf32> to vector<8x32xf32>
    %404 = math.tanh %403 : vector<8x32xf32>
    %405 = vector.extract_strided_slice %390 {offsets = [0, 96], sizes = [8, 32], strides = [1, 1]} : vector<8x128xf32> to vector<8x32xf32>
    %406 = arith.negf %405 : vector<8x32xf32>
    %407 = math.exp %406 : vector<8x32xf32>
    %cst_94 = arith.constant 1.000000e+00 : f32
    %408 = vector.broadcast %cst_94 : f32 to vector<8x32xf32>
    %409 = arith.addf %408, %407 : vector<8x32xf32>
    %410 = arith.divf %408, %409 : vector<8x32xf32>
    %411 = arith.mulf %402, %383 : vector<8x32xf32>
    %412 = arith.mulf %396, %404 : vector<8x32xf32>
    %413 = arith.addf %411, %412 : vector<8x32xf32>
    %414 = math.tanh %413 : vector<8x32xf32>
    %415 = arith.mulf %410, %414 : vector<8x32xf32>
    %416 = vector.extract_strided_slice %263 {offsets = [40, 0], sizes = [8, 128], strides = [1, 1]} : vector<64x128xf32> to vector<8x128xf32>
    %417 = arith.truncf %415 : vector<8x32xf32> to vector<8x32xbf16>
    %c0_95 = arith.constant 0 : index
    %c0_96 = arith.constant 0 : index
    %418 = vector.load %arg7[%c0_95, %c0_96] : memref<32x128xbf16, #tpu.memory_space<vmem>>, vector<32x128xbf16>
    %cst_97 = arith.constant dense<0.000000e+00> : vector<8x128xf32>
    %419 = tpu.matmul %417, %418, %cst_97 {dimension_numbers = #tpu.dot_dimension_numbers<[1], [0], [0], [1], [0, 0, 1, 1], [], []>} : vector<8x32xbf16>, vector<32x128xbf16>, vector<8x128xf32> -> vector<8x128xf32>
    %420 = arith.addf %416, %419 : vector<8x128xf32>
    %421 = vector.extract_strided_slice %420 {offsets = [0, 0], sizes = [8, 32], strides = [1, 1]} : vector<8x128xf32> to vector<8x32xf32>
    %422 = arith.negf %421 : vector<8x32xf32>
    %423 = math.exp %422 : vector<8x32xf32>
    %cst_98 = arith.constant 1.000000e+00 : f32
    %424 = vector.broadcast %cst_98 : f32 to vector<8x32xf32>
    %425 = arith.addf %424, %423 : vector<8x32xf32>
    %426 = arith.divf %424, %425 : vector<8x32xf32>
    %427 = vector.extract_strided_slice %420 {offsets = [0, 32], sizes = [8, 32], strides = [1, 1]} : vector<8x128xf32> to vector<8x32xf32>
    %428 = arith.negf %427 : vector<8x32xf32>
    %429 = math.exp %428 : vector<8x32xf32>
    %cst_99 = arith.constant 1.000000e+00 : f32
    %430 = vector.broadcast %cst_99 : f32 to vector<8x32xf32>
    %431 = arith.addf %430, %429 : vector<8x32xf32>
    %432 = arith.divf %430, %431 : vector<8x32xf32>
    %433 = vector.extract_strided_slice %420 {offsets = [0, 64], sizes = [8, 32], strides = [1, 1]} : vector<8x128xf32> to vector<8x32xf32>
    %434 = math.tanh %433 : vector<8x32xf32>
    %435 = vector.extract_strided_slice %420 {offsets = [0, 96], sizes = [8, 32], strides = [1, 1]} : vector<8x128xf32> to vector<8x32xf32>
    %436 = arith.negf %435 : vector<8x32xf32>
    %437 = math.exp %436 : vector<8x32xf32>
    %cst_100 = arith.constant 1.000000e+00 : f32
    %438 = vector.broadcast %cst_100 : f32 to vector<8x32xf32>
    %439 = arith.addf %438, %437 : vector<8x32xf32>
    %440 = arith.divf %438, %439 : vector<8x32xf32>
    %441 = arith.mulf %432, %413 : vector<8x32xf32>
    %442 = arith.mulf %426, %434 : vector<8x32xf32>
    %443 = arith.addf %441, %442 : vector<8x32xf32>
    %444 = math.tanh %443 : vector<8x32xf32>
    %445 = arith.mulf %440, %444 : vector<8x32xf32>
    %446 = vector.extract_strided_slice %263 {offsets = [48, 0], sizes = [8, 128], strides = [1, 1]} : vector<64x128xf32> to vector<8x128xf32>
    %447 = arith.truncf %445 : vector<8x32xf32> to vector<8x32xbf16>
    %c0_101 = arith.constant 0 : index
    %c0_102 = arith.constant 0 : index
    %448 = vector.load %arg7[%c0_101, %c0_102] : memref<32x128xbf16, #tpu.memory_space<vmem>>, vector<32x128xbf16>
    %cst_103 = arith.constant dense<0.000000e+00> : vector<8x128xf32>
    %449 = tpu.matmul %447, %448, %cst_103 {dimension_numbers = #tpu.dot_dimension_numbers<[1], [0], [0], [1], [0, 0, 1, 1], [], []>} : vector<8x32xbf16>, vector<32x128xbf16>, vector<8x128xf32> -> vector<8x128xf32>
    %450 = arith.addf %446, %449 : vector<8x128xf32>
    %451 = vector.extract_strided_slice %450 {offsets = [0, 0], sizes = [8, 32], strides = [1, 1]} : vector<8x128xf32> to vector<8x32xf32>
    %452 = arith.negf %451 : vector<8x32xf32>
    %453 = math.exp %452 : vector<8x32xf32>
    %cst_104 = arith.constant 1.000000e+00 : f32
    %454 = vector.broadcast %cst_104 : f32 to vector<8x32xf32>
    %455 = arith.addf %454, %453 : vector<8x32xf32>
    %456 = arith.divf %454, %455 : vector<8x32xf32>
    %457 = vector.extract_strided_slice %450 {offsets = [0, 32], sizes = [8, 32], strides = [1, 1]} : vector<8x128xf32> to vector<8x32xf32>
    %458 = arith.negf %457 : vector<8x32xf32>
    %459 = math.exp %458 : vector<8x32xf32>
    %cst_105 = arith.constant 1.000000e+00 : f32
    %460 = vector.broadcast %cst_105 : f32 to vector<8x32xf32>
    %461 = arith.addf %460, %459 : vector<8x32xf32>
    %462 = arith.divf %460, %461 : vector<8x32xf32>
    %463 = vector.extract_strided_slice %450 {offsets = [0, 64], sizes = [8, 32], strides = [1, 1]} : vector<8x128xf32> to vector<8x32xf32>
    %464 = math.tanh %463 : vector<8x32xf32>
    %465 = vector.extract_strided_slice %450 {offsets = [0, 96], sizes = [8, 32], strides = [1, 1]} : vector<8x128xf32> to vector<8x32xf32>
    %466 = arith.negf %465 : vector<8x32xf32>
    %467 = math.exp %466 : vector<8x32xf32>
    %cst_106 = arith.constant 1.000000e+00 : f32
    %468 = vector.broadcast %cst_106 : f32 to vector<8x32xf32>
    %469 = arith.addf %468, %467 : vector<8x32xf32>
    %470 = arith.divf %468, %469 : vector<8x32xf32>
    %471 = arith.mulf %462, %443 : vector<8x32xf32>
    %472 = arith.mulf %456, %464 : vector<8x32xf32>
    %473 = arith.addf %471, %472 : vector<8x32xf32>
    %474 = math.tanh %473 : vector<8x32xf32>
    %475 = arith.mulf %470, %474 : vector<8x32xf32>
    %476 = vector.extract_strided_slice %263 {offsets = [56, 0], sizes = [8, 128], strides = [1, 1]} : vector<64x128xf32> to vector<8x128xf32>
    %477 = arith.truncf %475 : vector<8x32xf32> to vector<8x32xbf16>
    %c0_107 = arith.constant 0 : index
    %c0_108 = arith.constant 0 : index
    %478 = vector.load %arg7[%c0_107, %c0_108] : memref<32x128xbf16, #tpu.memory_space<vmem>>, vector<32x128xbf16>
    %cst_109 = arith.constant dense<0.000000e+00> : vector<8x128xf32>
    %479 = tpu.matmul %477, %478, %cst_109 {dimension_numbers = #tpu.dot_dimension_numbers<[1], [0], [0], [1], [0, 0, 1, 1], [], []>} : vector<8x32xbf16>, vector<32x128xbf16>, vector<8x128xf32> -> vector<8x128xf32>
    %480 = arith.addf %476, %479 : vector<8x128xf32>
    %481 = vector.extract_strided_slice %480 {offsets = [0, 0], sizes = [8, 32], strides = [1, 1]} : vector<8x128xf32> to vector<8x32xf32>
    %482 = arith.negf %481 : vector<8x32xf32>
    %483 = math.exp %482 : vector<8x32xf32>
    %cst_110 = arith.constant 1.000000e+00 : f32
    %484 = vector.broadcast %cst_110 : f32 to vector<8x32xf32>
    %485 = arith.addf %484, %483 : vector<8x32xf32>
    %486 = arith.divf %484, %485 : vector<8x32xf32>
    %487 = vector.extract_strided_slice %480 {offsets = [0, 32], sizes = [8, 32], strides = [1, 1]} : vector<8x128xf32> to vector<8x32xf32>
    %488 = arith.negf %487 : vector<8x32xf32>
    %489 = math.exp %488 : vector<8x32xf32>
    %cst_111 = arith.constant 1.000000e+00 : f32
    %490 = vector.broadcast %cst_111 : f32 to vector<8x32xf32>
    %491 = arith.addf %490, %489 : vector<8x32xf32>
    %492 = arith.divf %490, %491 : vector<8x32xf32>
    %493 = vector.extract_strided_slice %480 {offsets = [0, 64], sizes = [8, 32], strides = [1, 1]} : vector<8x128xf32> to vector<8x32xf32>
    %494 = math.tanh %493 : vector<8x32xf32>
    %495 = vector.extract_strided_slice %480 {offsets = [0, 96], sizes = [8, 32], strides = [1, 1]} : vector<8x128xf32> to vector<8x32xf32>
    %496 = arith.negf %495 : vector<8x32xf32>
    %497 = math.exp %496 : vector<8x32xf32>
    %cst_112 = arith.constant 1.000000e+00 : f32
    %498 = vector.broadcast %cst_112 : f32 to vector<8x32xf32>
    %499 = arith.addf %498, %497 : vector<8x32xf32>
    %500 = arith.divf %498, %499 : vector<8x32xf32>
    %501 = arith.mulf %492, %473 : vector<8x32xf32>
    %502 = arith.mulf %486, %494 : vector<8x32xf32>
    %503 = arith.addf %501, %502 : vector<8x32xf32>
    %504 = math.tanh %503 : vector<8x32xf32>
    %505 = arith.mulf %500, %504 : vector<8x32xf32>
    %506 = arith.truncf %505 : vector<8x32xf32> to vector<8x32xbf16>
    %c0_113 = arith.constant 0 : index
    %c0_114 = arith.constant 0 : index
    %507 = vector.load %arg9[%c0_113, %c0_114] : memref<32x64xbf16, #tpu.memory_space<vmem>>, vector<32x64xbf16>
    %cst_115 = arith.constant dense<0.000000e+00> : vector<8x64xf32>
    %508 = tpu.matmul %506, %507, %cst_115 {dimension_numbers = #tpu.dot_dimension_numbers<[1], [0], [0], [1], [0, 0, 1, 1], [], []>} : vector<8x32xbf16>, vector<32x64xbf16>, vector<8x64xf32> -> vector<8x64xf32>
    %c0_116 = arith.constant 0 : index
    %c0_117 = arith.constant 0 : index
    %509 = vector.load %arg10[%c0_116, %c0_117] : memref<1x64xf32, #tpu.memory_space<vmem>>, vector<1x64xf32>
    %510 = vector.broadcast %509 : vector<1x64xf32> to vector<8x64xf32>
    %511 = arith.addf %508, %510 : vector<8x64xf32>
    %cst_118 = arith.constant 0.000000e+00 : f32
    %512 = vector.broadcast %cst_118 : f32 to vector<8x64xf32>
    %513 = arith.maximumf %511, %512 : vector<8x64xf32>
    %514 = arith.truncf %513 : vector<8x64xf32> to vector<8x64xbf16>
    %c0_119 = arith.constant 0 : index
    %c0_120 = arith.constant 0 : index
    %515 = vector.load %arg11[%c0_119, %c0_120] : memref<64x8xbf16, #tpu.memory_space<vmem>>, vector<64x8xbf16>
    %cst_121 = arith.constant dense<0.000000e+00> : vector<8x8xf32>
    %516 = tpu.matmul %514, %515, %cst_121 {dimension_numbers = #tpu.dot_dimension_numbers<[1], [0], [0], [1], [0, 0, 1, 1], [], []>} : vector<8x64xbf16>, vector<64x8xbf16>, vector<8x8xf32> -> vector<8x8xf32>
    %c0_122 = arith.constant 0 : index
    %c0_123 = arith.constant 0 : index
    %517 = vector.load %arg12[%c0_122, %c0_123] : memref<1x8xf32, #tpu.memory_space<vmem>>, vector<1x8xf32>
    %518 = vector.broadcast %517 : vector<1x8xf32> to vector<8x8xf32>
    %519 = arith.addf %516, %518 : vector<8x8xf32>
    %520 = vector.extract_strided_slice %519 {offsets = [0, 0], sizes = [2, 8], strides = [1, 1]} : vector<8x8xf32> to vector<2x8xf32>
    %c0_124 = arith.constant 0 : index
    %c0_125 = arith.constant 0 : index
    %521 = vector.load %arg13[%c0_124, %c0_125] : memref<2x8xf32, #tpu.memory_space<vmem>>, vector<2x8xf32>
    tpu.vector_store %arg13[%c0_124, %c0_125], %520 {strides = array<i32>} : memref<2x8xf32, #tpu.memory_space<vmem>>, vector<2x8xf32>,
    return
  }
  func.func @transform_0(%arg0: i32) -> (i32, i32) {
    %c0_i32 = arith.constant 0 : i32
    %c0_i32_0 = arith.constant 0 : i32
    %c0_i32_1 = arith.constant 0 : i32
    return %c0_i32, %c0_i32_0 : i32, i32
  }
  func.func @transform_1(%arg0: i32) -> (i32, i32) {
    %c0_i32 = arith.constant 0 : i32
    %c0_i32_0 = arith.constant 0 : i32
    %c0_i32_1 = arith.constant 0 : i32
    return %c0_i32, %c0_i32_0 : i32, i32
  }
  func.func @transform_2(%arg0: i32) -> (i32, i32) {
    %c0_i32 = arith.constant 0 : i32
    %c0_i32_0 = arith.constant 0 : i32
    %c0_i32_1 = arith.constant 0 : i32
    return %c0_i32, %c0_i32_0 : i32, i32
  }
  func.func @transform_3(%arg0: i32) -> (i32, i32) {
    %c0_i32 = arith.constant 0 : i32
    %c0_i32_0 = arith.constant 0 : i32
    %c0_i32_1 = arith.constant 0 : i32
    return %c0_i32, %c0_i32_0 : i32, i32
  }
  func.func @transform_4(%arg0: i32) -> (i32, i32) {
    %c0_i32 = arith.constant 0 : i32
    %c0_i32_0 = arith.constant 0 : i32
    %c0_i32_1 = arith.constant 0 : i32
    return %c0_i32, %c0_i32_0 : i32, i32
  }
  func.func @transform_5(%arg0: i32) -> (i32, i32) {
    %c0_i32 = arith.constant 0 : i32
    %c0_i32_0 = arith.constant 0 : i32
    %c0_i32_1 = arith.constant 0 : i32
    return %c0_i32, %c0_i32_0 : i32, i32
  }
  func.func @transform_6(%arg0: i32) -> (i32, i32) {
    %c0_i32 = arith.constant 0 : i32
    %c0_i32_0 = arith.constant 0 : i32
    %c0_i32_1 = arith.constant 0 : i32
    return %c0_i32, %c0_i32_0 : i32, i32
  }
  func.func @transform_7(%arg0: i32) -> (i32, i32) {
    %c0_i32 = arith.constant 0 : i32
    %c0_i32_0 = arith.constant 0 : i32
    %c0_i32_1 = arith.constant 0 : i32
    return %c0_i32, %c0_i32_0 : i32, i32
  }
  func.func @transform_8(%arg0: i32) -> (i32, i32) {
    %c0_i32 = arith.constant 0 : i32
    %c0_i32_0 = arith.constant 0 : i32
    %c0_i32_1 = arith.constant 0 : i32
    return %c0_i32, %c0_i32_0 : i32, i32
  }
  func.func @transform_9(%arg0: i32) -> (i32, i32) {
    %c0_i32 = arith.constant 0 : i32
    %c0_i32_0 = arith.constant 0 : i32
    %c0_i32_1 = arith.constant 0 : i32
    return %c0_i32, %c0_i32_0 : i32, i32
  }
  func.func @transform_10(%arg0: i32) -> (i32, i32) {
    %c0_i32 = arith.constant 0 : i32
    %c0_i32_0 = arith.constant 0 : i32
    %c0_i32_1 = arith.constant 0 : i32
    return %c0_i32, %c0_i32_0 : i32, i32
  }
  func.func @transform_11(%arg0: i32) -> (i32, i32) {
    %c0_i32 = arith.constant 0 : i32
    %c0_i32_0 = arith.constant 0 : i32
    %c0_i32_1 = arith.constant 0 : i32
    return %c0_i32, %c0_i32_0 : i32, i32
  }
  func.func @transform_12(%arg0: i32) -> (i32, i32) {
    %c0_i32 = arith.constant 0 : i32
    %c0_i32_0 = arith.constant 0 : i32
    %c0_i32_1 = arith.constant 0 : i32
    return %c0_i32, %c0_i32_0 : i32, i32
  }
}

</mosaic_0001>

<llo_original>
// kernel: rnn_forward.1
$region0: #{rnn_forward.1}
  #allocation0 [shape = 'u32[]', space=smem, size = 0x4, offset = 0x4, fixed_abs, tag = 'smem constant byte address 0x4 - core index']
  #allocation1 [shape = 'u32[144,128]{1,0:T(1,128)}', space=vmem, size = 0x12000, scoped, tag = 'internal scratch']
  %s0 = inlined_call_operand.vmem [shape: s32[64,1], index: 0, kind: input, shape index: {}]
  %s1 = inlined_call_operand.vmem [shape: bf16[128,32], index: 1, kind: input, shape index: {}]
  %s2 = inlined_call_operand.vmem [shape: bf16[32,128], index: 2, kind: input, shape index: {}]
  %s3 = inlined_call_operand.vmem [shape: bf16[32,128], index: 3, kind: input, shape index: {}]
  %s4 = inlined_call_operand.vmem [shape: f32[1,128], index: 4, kind: input, shape index: {}]
  %s5 = inlined_call_operand.vmem [shape: bf16[32,128], index: 5, kind: input, shape index: {}]
  %s6 = inlined_call_operand.vmem [shape: bf16[32,128], index: 6, kind: input, shape index: {}]
  %s7 = inlined_call_operand.vmem [shape: f32[1,128], index: 7, kind: input, shape index: {}]
  %s8 = inlined_call_operand.vmem [shape: bf16[32,64], index: 8, kind: input, shape index: {}]
  %s9 = inlined_call_operand.vmem [shape: f32[1,64], index: 9, kind: input, shape index: {}]
  %s10 = inlined_call_operand.vmem [shape: bf16[64,8], index: 10, kind: input, shape index: {}]
  %s11 = inlined_call_operand.vmem [shape: f32[1,8], index: 11, kind: input, shape index: {}]
  %s12 = inlined_call_operand.hbm [shape: f32[2,8], index: 12, kind: output, shape index: {}]
  %s13 = sld [smem:[#allocation0]]
  $region58: #{rnn_forward.1} parent=0
    _
  %s15 = ssub.s32 1, %s13
  %s16 = scalar_select 0, %s15, %s13
  $region1: #{rnn_forward.1} parent=0
    #allocation2 [shape = 'u8[1024]{0}', space=vmem, size = 0x400, scoped, tag = 'output window, operand 0, single buffered']
    #allocation3 [shape = 's32[1]{0}', space=sflag, size = 0x4, scoped, tag = 'scoped memory for rnn_forward.1']
    %17 = vsyncpa [#allocation3], 0
    // Predicated region
    $region2: #{rnn_forward.1} parent=1 // pred_check
      _
    $region3: #{rnn_forward.1} parent=1 // pred_check_branch
      %19 = sbr.rel (0) target = $region5
    $region4: #{rnn_forward.1} parent=1 // pred_region
      _
    $region5: #{rnn_forward.1} parent=1 // pred_fallthru
      _
    // Predicated region
    $region6: #{rnn_forward.1} parent=1 // pred_check
      _
    $region7: #{rnn_forward.1} parent=1 // pred_check_branch
      %21 = sbr.rel (0) target = $region9
    $region8: #{rnn_forward.1} parent=1 // pred_region
      _
    $region9: #{rnn_forward.1} parent=1 // pred_fallthru
      _
    // Predicated region
    $region10: #{rnn_forward.1} parent=1 // pred_check
      _
    $region11: #{rnn_forward.1} parent=1 // pred_check_branch
      %23 = sbr.rel (0) target = $region13
    $region12: #{rnn_forward.1} parent=1 // pred_region
      _
    $region13: #{rnn_forward.1} parent=1 // pred_fallthru
      _
    // Predicated region
    $region14: #{rnn_forward.1} parent=1 // pred_check
      _
    $region15: #{rnn_forward.1} parent=1 // pred_check_branch
      %25 = sbr.rel (0) target = $region17
    $region16: #{rnn_forward.1} parent=1 // pred_region
      _
    $region17: #{rnn_forward.1} parent=1 // pred_fallthru
      _
    // Predicated region
    $region18: #{rnn_forward.1} parent=1 // pred_check
      _
    $region19: #{rnn_forward.1} parent=1 // pred_check_branch
      %27 = sbr.rel (0) target = $region21
    $region20: #{rnn_forward.1} parent=1 // pred_region
      _
    $region21: #{rnn_forward.1} parent=1 // pred_fallthru
      _
    // Predicated region
    $region22: #{rnn_forward.1} parent=1 // pred_check
      _
    $region23: #{rnn_forward.1} parent=1 // pred_check_branch
      %29 = sbr.rel (0) target = $region25
    $region24: #{rnn_forward.1} parent=1 // pred_region
      _
    $region25: #{rnn_forward.1} parent=1 // pred_fallthru
      _
    // Predicated region
    $region26: #{rnn_forward.1} parent=1 // pred_check
      _
    $region27: #{rnn_forward.1} parent=1 // pred_check_branch
      %31 = sbr.rel (0) target = $region29
    $region28: #{rnn_forward.1} parent=1 // pred_region
      _
    $region29: #{rnn_forward.1} parent=1 // pred_fallthru
      _
    // Predicated region
    $region30: #{rnn_forward.1} parent=1 // pred_check
      _
    $region31: #{rnn_forward.1} parent=1 // pred_check_branch
      %33 = sbr.rel (0) target = $region33
    $region32: #{rnn_forward.1} parent=1 // pred_region
      _
    $region33: #{rnn_forward.1} parent=1 // pred_fallthru
      _
    // Predicated region
    $region34: #{rnn_forward.1} parent=1 // pred_check
      _
    $region35: #{rnn_forward.1} parent=1 // pred_check_branch
      %35 = sbr.rel (0) target = $region37
    $region36: #{rnn_forward.1} parent=1 // pred_region
      _
    $region37: #{rnn_forward.1} parent=1 // pred_fallthru
      _
    // Predicated region
    $region38: #{rnn_forward.1} parent=1 // pred_check
      _
    $region39: #{rnn_forward.1} parent=1 // pred_check_branch
      %37 = sbr.rel (0) target = $region41
    $region40: #{rnn_forward.1} parent=1 // pred_region
      _
    $region41: #{rnn_forward.1} parent=1 // pred_fallthru
      _
    // Predicated region
    $region42: #{rnn_forward.1} parent=1 // pred_check
      _
    $region43: #{rnn_forward.1} parent=1 // pred_check_branch
      %39 = sbr.rel (0) target = $region45
    $region44: #{rnn_forward.1} parent=1 // pred_region
      _
    $region45: #{rnn_forward.1} parent=1 // pred_fallthru
      _
    // Predicated region
    $region46: #{rnn_forward.1} parent=1 // pred_check
      _
    $region47: #{rnn_forward.1} parent=1 // pred_check_branch
      %41 = sbr.rel (0) target = $region49
    $region48: #{rnn_forward.1} parent=1 // pred_region
      _
    $region49: #{rnn_forward.1} parent=1 // pred_fallthru
      _
    %v43 = vld [vmem:[%s0] sm:$0xff]
    %v44 = vld [vmem:[%s0 + $0x8] sm:$0xff]
    %v45 = vld [vmem:[%s0 + $0x10] sm:$0xff]
    %v46 = vld [vmem:[%s0 + $0x18] sm:$0xff]
    %v47 = vld [vmem:[%s0 + $0x20] sm:$0xff]
    %v48 = vld [vmem:[%s0 + $0x28] sm:$0xff]
    %v49 = vld [vmem:[%s0 + $0x30] sm:$0xff]
    %v50 = vld [vmem:[%s0 + $0x38] sm:$0xff]
    %v51 = vlaneseq
    %v52 = vand.u32 %v51, 127
    %53 = vset.pattern.permute.xlu0 0
    %54 = vperm.xlu0 %53, %v43
    %v55 = vpop.permute.xlu0 %54
    %56 = vset.pattern.permute.xlu0 0
    %57 = vperm.xlu0 %56, %v44
    %v58 = vpop.permute.xlu0 %57
    %59 = vset.pattern.permute.xlu0 0
    %60 = vperm.xlu0 %59, %v45
    %v61 = vpop.permute.xlu0 %60
    %62 = vset.pattern.permute.xlu0 0
    %63 = vperm.xlu0 %62, %v46
    %v64 = vpop.permute.xlu0 %63
    %65 = vset.pattern.permute.xlu0 0
    %66 = vperm.xlu0 %65, %v47
    %v67 = vpop.permute.xlu0 %66
    %68 = vset.pattern.permute.xlu0 0
    %69 = vperm.xlu0 %68, %v48
    %v70 = vpop.permute.xlu0 %69
    %71 = vset.pattern.permute.xlu0 0
    %72 = vperm.xlu0 %71, %v49
    %v73 = vpop.permute.xlu0 %72
    %74 = vset.pattern.permute.xlu0 0
    %75 = vperm.xlu0 %74, %v50
    %v76 = vpop.permute.xlu0 %75
    %vm77 = vcmp.eq.s32.totalorder %v55, %v52
    %vm78 = vcmp.eq.s32.totalorder %v58, %v52
    %vm79 = vcmp.eq.s32.totalorder %v61, %v52
    %vm80 = vcmp.eq.s32.totalorder %v64, %v52
    %vm81 = vcmp.eq.s32.totalorder %v67, %v52
    %vm82 = vcmp.eq.s32.totalorder %v70, %v52
    %vm83 = vcmp.eq.s32.totalorder %v73, %v52
    %vm84 = vcmp.eq.s32.totalorder %v76, %v52
    %v85 = vsel %vm77, 1, 0
    %v86 = vsel %vm78, 1, 0
    %v87 = vsel %vm79, 1, 0
    %v88 = vsel %vm80, 1, 0
    %v89 = vsel %vm81, 1, 0
    %v90 = vsel %vm82, 1, 0
    %v91 = vsel %vm83, 1, 0
    %v92 = vsel %vm84, 1, 0
    %v93 = vcvt.s32.f32 %v85
    %v94 = vcvt.s32.f32 %v86
    %v95 = vcvt.s32.f32 %v87
    %v96 = vcvt.s32.f32 %v88
    %v97 = vcvt.s32.f32 %v89
    %v98 = vcvt.s32.f32 %v90
    %v99 = vcvt.s32.f32 %v91
    %v100 = vcvt.s32.f32 %v92
    %v101 = vpack.c.bf16 %v94, %v93
    %v102 = vpack.c.bf16 %v96, %v95
    %v103 = vpack.c.bf16 %v98, %v97
    %v104 = vpack.c.bf16 %v100, %v99
    %v105 = vld [vmem:[%s1] sm:$0xf]
    %v106 = vld [vmem:[%s1 + $0x4] sm:$0xf]
    %v107 = vld [vmem:[%s1 + $0x8] sm:$0xf]
    %v108 = vld [vmem:[%s1 + $0xc] sm:$0xf]
    %v109 = vld [vmem:[%s1 + $0x10] sm:$0xf]
    %v110 = vld [vmem:[%s1 + $0x14] sm:$0xf]
    %v111 = vld [vmem:[%s1 + $0x18] sm:$0xf]
    %v112 = vld [vmem:[%s1 + $0x1c] sm:$0xf]
    %v113 = vld [vmem:[%s1 + $0x20] sm:$0xf]
    %v114 = vld [vmem:[%s1 + $0x24] sm:$0xf]
    %v115 = vld [vmem:[%s1 + $0x28] sm:$0xf]
    %v116 = vld [vmem:[%s1 + $0x2c] sm:$0xf]
    %v117 = vld [vmem:[%s1 + $0x30] sm:$0xf]
    %v118 = vld [vmem:[%s1 + $0x34] sm:$0xf]
    %v119 = vld [vmem:[%s1 + $0x38] sm:$0xf]
    %v120 = vld [vmem:[%s1 + $0x3c] sm:$0xf]
    %v137 = vunpack.c.l.b16 %v105
    %v138 = vunpack.c.l.b16 %v106
    %v139 = vunpack.c.l.b16 %v107
    %v140 = vunpack.c.l.b16 %v108
    %v141 = vunpack.c.l.b16 %v109
    %v142 = vunpack.c.l.b16 %v110
    %v143 = vunpack.c.l.b16 %v111
    %v144 = vunpack.c.l.b16 %v112
    %v145 = vunpack.c.l.b16 %v113
    %v146 = vunpack.c.l.b16 %v114
    %v147 = vunpack.c.l.b16 %v115
    %v148 = vunpack.c.l.b16 %v116
    %v149 = vunpack.c.l.b16 %v117
    %v150 = vunpack.c.l.b16 %v118
    %v151 = vunpack.c.l.b16 %v119
    %v152 = vunpack.c.l.b16 %v120
    %v153 = vpack.c.b16 %v138, %v137
    %v154 = vpack.c.b16 %v140, %v139
    %v155 = vpack.c.b16 %v142, %v141
    %v156 = vpack.c.b16 %v144, %v143
    %v157 = vpack.c.b16 %v146, %v145
    %v158 = vpack.c.b16 %v148, %v147
    %v159 = vpack.c.b16 %v150, %v149
    %v160 = vpack.c.b16 %v152, %v151
    %169 = vmatprep.subr.bf16.mxu0 0
    %170 = vmatpush1.bf16.msra.mxu0 %v160
    %171 = vmatprep.subr.bf16.mxu0 0
    %172 = vmatpush1.bf16.msra.mxu0 %v159
    %173 = vmatprep.subr.bf16.mxu0 0
    %174 = vmatpush1.bf16.msra.mxu0 %v158
    %175 = vmatprep.subr.bf16.mxu0 0
    %176 = vmatpush1.bf16.msra.mxu0 %v157
    %177 = vmatprep.subr.bf16.mxu0 0
    %178 = vmatpush1.bf16.msra.mxu0 %v156
    %179 = vmatprep.subr.bf16.mxu0 0
    %180 = vmatpush1.bf16.msra.mxu0 %v155
    %181 = vmatprep.subr.bf16.mxu0 0
    %182 = vmatpush1.bf16.msra.mxu0 %v154
    %183 = vmatprep.subr.bf16.mxu0 0
    %184 = vmatpush1.bf16.msra.mxu0 %v153
    %185 = vmatprep.subr.bf16.mxu0 0
    %186 = vmatpush2.bf16.msra.mxu0 0
    %187 = vmatprep.subr.bf16.mxu0 0
    %188 = vmatpush2.bf16.msra.mxu0 0
    %189 = vmatprep.subr.bf16.mxu0 0
    %190 = vmatpush2.bf16.msra.mxu0 0
    %191 = vmatprep.subr.bf16.mxu0 0
    %192 = vmatpush2.bf16.msra.mxu0 0
    %193 = vmatprep.subr.bf16.mxu0 0
    %194 = vmatpush2.bf16.msra.mxu0 0
    %195 = vmatprep.subr.bf16.mxu0 0
    %196 = vmatpush2.bf16.msra.mxu0 0
    %197 = vmatprep.subr.bf16.mxu0 0
    %198 = vmatpush2.bf16.msra.mxu0 0
    %199 = vmatprep.subr.bf16.mxu0 0
    %200 = vmatpush2.bf16.msra.mxu0 0
    %201 = vmatprep.mubr.bf16.mxu0 0
    %202 = vmatmul.mubr.bf16.gmra.mxu0 %v101
    %v203 = vpop.f32.mrf.mxu0
    %v204 = vadd.f32 0.0, %v203
    %v205 = vpop.f32.mrf.mxu0
    %v206 = vpop.f32.mrf.mxu0
    %v207 = vadd.f32 0.0, %v206
    %v208 = vpop.f32.mrf.mxu0
    %209 = vmatprep.mubr.bf16.mxu0 0
    %210 = vmatmul.mubr.bf16.gmra.mxu0 %v102
    %v211 = vpop.f32.mrf.mxu0
    %v212 = vadd.f32 0.0, %v211
    %v213 = vpop.f32.mrf.mxu0
    %v214 = vpop.f32.mrf.mxu0
    %v215 = vadd.f32 0.0, %v214
    %v216 = vpop.f32.mrf.mxu0
    %217 = vmatprep.mubr.bf16.mxu0 0
    %218 = vmatmul.mubr.bf16.gmra.mxu0 %v103
    %v219 = vpop.f32.mrf.mxu0
    %v220 = vadd.f32 0.0, %v219
    %v221 = vpop.f32.mrf.mxu0
    %v222 = vpop.f32.mrf.mxu0
    %v223 = vadd.f32 0.0, %v222
    %v224 = vpop.f32.mrf.mxu0
    %225 = vmatprep.mubr.bf16.mxu0 0
    %226 = vmatmul.mubr.bf16.gmra.mxu0 %v104
    %v227 = vpop.f32.mrf.mxu0
    %v228 = vadd.f32 0.0, %v227
    %v229 = vpop.f32.mrf.mxu0
    %v230 = vpop.f32.mrf.mxu0
    %v231 = vadd.f32 0.0, %v230
    %v232 = vpop.f32.mrf.mxu0
    %233 = vdwg.mxu0
    %v234 = vpack.c.bf16 %v207, %v204
    %v235 = vpack.c.bf16 %v215, %v212
    %v236 = vpack.c.bf16 %v223, %v220
    %v237 = vpack.c.bf16 %v231, %v228
    %v238 = vld [vmem:[%s2] sm:$0xf]
    %v239 = vld [vmem:[%s2 + $0x4] sm:$0xf]
    %v240 = vld [vmem:[%s2 + $0x8] sm:$0xf]
    %v241 = vld [vmem:[%s2 + $0xc] sm:$0xf]
    %v242 = vld [vmem:[%s4] sm:$0x1]
    %v244 = vlaneseq
    %v245 = vshrl.u32 %v244, 7
    %v246 = vsub.s32 0, %v245
    %v247 = vrot.slane %v242, %v246
    %v253 = vunpack.c.l.b16 %v238
    %v254 = vunpack.c.l.b16 %v239
    %v255 = vunpack.c.l.b16 %v240
    %v256 = vunpack.c.l.b16 %v241
    %v257 = vpack.c.b16 %v254, %v253
    %v258 = vpack.c.b16 %v256, %v255
    %vm261 = vcmask 261120
    %v263 = vsel %vm261, %v234, 0
    %v266 = vsel %vm261, %v235, 0
    %v269 = vsel %vm261, %v236, 0
    %v272 = vsel %vm261, %v237, 0
    %274 = vmatprep.subr.bf16.mxu0 0
    %275 = vmatpush1.bf16.msra.mxu0 0
    %276 = vmatprep.subr.bf16.mxu0 0
    %277 = vmatpush1.bf16.msra.mxu0 0
    %278 = vmatprep.subr.bf16.mxu0 0
    %279 = vmatpush1.bf16.msra.mxu0 0
    %280 = vmatprep.subr.bf16.mxu0 0
    %281 = vmatpush1.bf16.msra.mxu0 0
    %282 = vmatprep.subr.bf16.mxu0 0
    %283 = vmatpush1.bf16.msra.mxu0 0
    %284 = vmatprep.subr.bf16.mxu0 0
    %285 = vmatpush1.bf16.msra.mxu0 0
    %286 = vmatprep.subr.bf16.mxu0 0
    %287 = vmatpush1.bf16.msra.mxu0 %v258
    %288 = vmatprep.subr.bf16.mxu0 0
    %289 = vmatpush1.bf16.msra.mxu0 %v257
    %290 = vmatprep.subr.bf16.mxu0 0
    %291 = vmatpush2.bf16.msra.mxu0 0
    %292 = vmatprep.subr.bf16.mxu0 0
    %293 = vmatpush2.bf16.msra.mxu0 0
    %294 = vmatprep.subr.bf16.mxu0 0
    %295 = vmatpush2.bf16.msra.mxu0 0
    %296 = vmatprep.subr.bf16.mxu0 0
    %297 = vmatpush2.bf16.msra.mxu0 0
    %298 = vmatprep.subr.bf16.mxu0 0
    %299 = vmatpush2.bf16.msra.mxu0 0
    %300 = vmatprep.subr.bf16.mxu0 0
    %301 = vmatpush2.bf16.msra.mxu0 0
    %302 = vmatprep.subr.bf16.mxu0 0
    %303 = vmatpush2.bf16.msra.mxu0 0
    %304 = vmatprep.subr.bf16.mxu0 0
    %305 = vmatpush2.bf16.msra.mxu0 0
    %306 = vmatprep.mubr.bf16.mxu0 0
    %307 = vmatmul.mubr.bf16.gmra.mxu0 %v263
    %v308 = vpop.f32.mrf.mxu0
    %v309 = vadd.f32 %v247, %v308
    %v310 = vpop.f32.mrf.mxu0
    %v311 = vpop.f32.mrf.mxu0
    %v312 = vadd.f32 %v247, %v311
    %v313 = vpop.f32.mrf.mxu0
    %314 = vmatprep.mubr.bf16.mxu0 0
    %315 = vmatmul.mubr.bf16.gmra.mxu0 %v266
    %v316 = vpop.f32.mrf.mxu0
    %v317 = vadd.f32 %v247, %v316
    %v318 = vpop.f32.mrf.mxu0
    %v319 = vpop.f32.mrf.mxu0
    %v320 = vadd.f32 %v247, %v319
    %v321 = vpop.f32.mrf.mxu0
    %322 = vmatprep.mubr.bf16.mxu0 0
    %323 = vmatmul.mubr.bf16.gmra.mxu0 %v269
    %v324 = vpop.f32.mrf.mxu0
    %v325 = vadd.f32 %v247, %v324
    %v326 = vpop.f32.mrf.mxu0
    %v327 = vpop.f32.mrf.mxu0
    %v328 = vadd.f32 %v247, %v327
    %v329 = vpop.f32.mrf.mxu0
    %330 = vmatprep.mubr.bf16.mxu0 0
    %331 = vmatmul.mubr.bf16.gmra.mxu0 %v272
    %v332 = vpop.f32.mrf.mxu0
    %v333 = vadd.f32 %v247, %v332
    %v334 = vpop.f32.mrf.mxu0
    %v335 = vpop.f32.mrf.mxu0
    %v336 = vadd.f32 %v247, %v335
    %v337 = vpop.f32.mrf.mxu0
    %338 = vdwg.mxu0
    %v339 = vld [vmem:[%s3] sm:$0xf]
    %v340 = vld [vmem:[%s3 + $0x4] sm:$0xf]
    %v341 = vld [vmem:[%s3 + $0x8] sm:$0xf]
    %v342 = vld [vmem:[%s3 + $0xc] sm:$0xf]
    %v347 = vunpack.c.l.b16 %v339
    %v348 = vunpack.c.l.b16 %v340
    %v349 = vunpack.c.l.b16 %v341
    %v350 = vunpack.c.l.b16 %v342
    %v351 = vpack.c.b16 %v348, %v347
    %v352 = vpack.c.b16 %v350, %v349
    %v356 = vsel %vm261, 0, 0
    %358 = vmatprep.subr.bf16.mxu0 0
    %359 = vmatpush1.bf16.msra.mxu0 0
    %360 = vmatprep.subr.bf16.mxu0 0
    %361 = vmatpush1.bf16.msra.mxu0 0
    %362 = vmatprep.subr.bf16.mxu0 0
    %363 = vmatpush1.bf16.msra.mxu0 0
    %364 = vmatprep.subr.bf16.mxu0 0
    %365 = vmatpush1.bf16.msra.mxu0 0
    %366 = vmatprep.subr.bf16.mxu0 0
    %367 = vmatpush1.bf16.msra.mxu0 0
    %368 = vmatprep.subr.bf16.mxu0 0
    %369 = vmatpush1.bf16.msra.mxu0 0
    %370 = vmatprep.subr.bf16.mxu0 0
    %371 = vmatpush1.bf16.msra.mxu0 %v352
    %372 = vmatprep.subr.bf16.mxu0 0
    %373 = vmatpush1.bf16.msra.mxu0 %v351
    %374 = vmatprep.subr.bf16.mxu0 0
    %375 = vmatpush2.bf16.msra.mxu0 0
    %376 = vmatprep.subr.bf16.mxu0 0
    %377 = vmatpush2.bf16.msra.mxu0 0
    %378 = vmatprep.subr.bf16.mxu0 0
    %379 = vmatpush2.bf16.msra.mxu0 0
    %380 = vmatprep.subr.bf16.mxu0 0
    %381 = vmatpush2.bf16.msra.mxu0 0
    %382 = vmatprep.subr.bf16.mxu0 0
    %383 = vmatpush2.bf16.msra.mxu0 0
    %384 = vmatprep.subr.bf16.mxu0 0
    %385 = vmatpush2.bf16.msra.mxu0 0
    %386 = vmatprep.subr.bf16.mxu0 0
    %387 = vmatpush2.bf16.msra.mxu0 0
    %388 = vmatprep.subr.bf16.mxu0 0
    %389 = vmatpush2.bf16.msra.mxu0 0
    %390 = vmatprep.mubr.bf16.mxu0 0
    %391 = vmatmul.mubr.bf16.gmra.mxu0 %v356
    %v392 = vpop.f32.mrf.mxu0
    %v393 = vadd.f32 0.0, %v392
    %v394 = vpop.f32.mrf.mxu0
    %v395 = vpop.f32.mrf.mxu0
    %v396 = vpop.f32.mrf.mxu0
    %397 = vdwg.mxu0
    %v398 = vadd.f32 %v309, %v393
    %v399 = vxor.u32 %v398, 2147483648
    %v400 = vmul.f32 %v399, 1.442695
    %v401 = vpow.pop %v400
    %v402 = vadd.f32 %v401, 1.0
    %v403 = vrcp.pop %v402
    %v404 = vmul.f32 1.0, %v403
    %v405 = vtanh.pop %v398
    %v406 = vmul.f32 %v404, 0.0
    %408 = vrot.lane.b32.xlu0 %v405, 64
    %v409 = vpop.permute.xlu0 %408
    %v411 = vmul.f32 %v404, %v409
    %413 = vrot.lane.b32.xlu0 %v411, 32
    %v414 = vpop.permute.xlu0 %413
    %v416 = vadd.f32 %v406, %v414
    %v417 = vtanh.pop %v416
    %419 = vrot.lane.b32.xlu0 %v417, 64
    %v420 = vpop.permute.xlu0 %419
    %v422 = vmul.f32 %v404, %v420
    %v423 = vpack.c.bf16 %v422, %v422
    %425 = vrot.lane.b32.xlu0 %v423, 32
    %v426 = vpop.permute.xlu0 %425
    %v428 = vsel %vm261, %v426, 0
    %430 = vmatprep.subr.bf16.mxu0 0
    %431 = vmatpush1.bf16.msra.mxu0 0
    %432 = vmatprep.subr.bf16.mxu0 0
    %433 = vmatpush1.bf16.msra.mxu0 0
    %434 = vmatprep.subr.bf16.mxu0 0
    %435 = vmatpush1.bf16.msra.mxu0 0
    %436 = vmatprep.subr.bf16.mxu0 0
    %437 = vmatpush1.bf16.msra.mxu0 0
    %438 = vmatprep.subr.bf16.mxu0 0
    %439 = vmatpush1.bf16.msra.mxu0 0
    %440 = vmatprep.subr.bf16.mxu0 0
    %441 = vmatpush1.bf16.msra.mxu0 0
    %442 = vmatprep.subr.bf16.mxu0 0
    %443 = vmatpush1.bf16.msra.mxu0 %v352
    %444 = vmatprep.subr.bf16.mxu0 0
    %445 = vmatpush1.bf16.msra.mxu0 %v351
    %446 = vmatprep.subr.bf16.mxu0 0
    %447 = vmatpush2.bf16.msra.mxu0 0
    %448 = vmatprep.subr.bf16.mxu0 0
    %449 = vmatpush2.bf16.msra.mxu0 0
    %450 = vmatprep.subr.bf16.mxu0 0
    %451 = vmatpush2.bf16.msra.mxu0 0
    %452 = vmatprep.subr.bf16.mxu0 0
    %453 = vmatpush2.bf16.msra.mxu0 0
    %454 = vmatprep.subr.bf16.mxu0 0
    %455 = vmatpush2.bf16.msra.mxu0 0
    %456 = vmatprep.subr.bf16.mxu0 0
    %457 = vmatpush2.bf16.msra.mxu0 0
    %458 = vmatprep.subr.bf16.mxu0 0
    %459 = vmatpush2.bf16.msra.mxu0 0
    %460 = vmatprep.subr.bf16.mxu0 0
    %461 = vmatpush2.bf16.msra.mxu0 0
    %462 = vmatprep.mubr.bf16.mxu0 0
    %463 = vmatmul.mubr.bf16.gmra.mxu0 %v428
    %v464 = vpop.f32.mrf.mxu0
    %v465 = vadd.f32 0.0, %v464
    %v466 = vpop.f32.mrf.mxu0
    %v467 = vpop.f32.mrf.mxu0
    %v468 = vpop.f32.mrf.mxu0
    %469 = vdwg.mxu0
    %v470 = vadd.f32 %v312, %v465
    %v471 = vxor.u32 %v470, 2147483648
    %v472 = vmul.f32 %v471, 1.442695
    %v473 = vpow.pop %v472
    %v474 = vadd.f32 %v473, 1.0
    %v475 = vrcp.pop %v474
    %v476 = vmul.f32 1.0, %v475
    %v477 = vtanh.pop %v470
    %v478 = vmul.f32 %v476, %v416
    %480 = vrot.lane.b32.xlu0 %v477, 64
    %v481 = vpop.permute.xlu0 %480
    %v483 = vmul.f32 %v476, %v481
    %485 = vrot.lane.b32.xlu0 %v483, 32
    %v486 = vpop.permute.xlu0 %485
    %v488 = vadd.f32 %v478, %v486
    %v489 = vtanh.pop %v488
    %491 = vrot.lane.b32.xlu0 %v489, 64
    %v492 = vpop.permute.xlu0 %491
    %v494 = vmul.f32 %v476, %v492
    %v495 = vpack.c.bf16 %v494, %v494
    %497 = vrot.lane.b32.xlu0 %v495, 32
    %v498 = vpop.permute.xlu0 %497
    %v500 = vsel %vm261, %v498, 0
    %502 = vmatprep.subr.bf16.mxu0 0
    %503 = vmatpush1.bf16.msra.mxu0 0
    %504 = vmatprep.subr.bf16.mxu0 0
    %505 = vmatpush1.bf16.msra.mxu0 0
    %506 = vmatprep.subr.bf16.mxu0 0
    %507 = vmatpush1.bf16.msra.mxu0 0
    %508 = vmatprep.subr.bf16.mxu0 0
    %509 = vmatpush1.bf16.msra.mxu0 0
    %510 = vmatprep.subr.bf16.mxu0 0
    %511 = vmatpush1.bf16.msra.mxu0 0
    %512 = vmatprep.subr.bf16.mxu0 0
    %513 = vmatpush1.bf16.msra.mxu0 0
    %514 = vmatprep.subr.bf16.mxu0 0
    %515 = vmatpush1.bf16.msra.mxu0 %v352
    %516 = vmatprep.subr.bf16.mxu0 0
    %517 = vmatpush1.bf16.msra.mxu0 %v351
    %518 = vmatprep.subr.bf16.mxu0 0
    %519 = vmatpush2.bf16.msra.mxu0 0
    %520 = vmatprep.subr.bf16.mxu0 0
    %521 = vmatpush2.bf16.msra.mxu0 0
    %522 = vmatprep.subr.bf16.mxu0 0
    %523 = vmatpush2.bf16.msra.mxu0 0
    %524 = vmatprep.subr.bf16.mxu0 0
    %525 = vmatpush2.bf16.msra.mxu0 0
    %526 = vmatprep.subr.bf16.mxu0 0
    %527 = vmatpush2.bf16.msra.mxu0 0
    %528 = vmatprep.subr.bf16.mxu0 0
    %529 = vmatpush2.bf16.msra.mxu0 0
    %530 = vmatprep.subr.bf16.mxu0 0
    %531 = vmatpush2.bf16.msra.mxu0 0
    %532 = vmatprep.subr.bf16.mxu0 0
    %533 = vmatpush2.bf16.msra.mxu0 0
    %534 = vmatprep.mubr.bf16.mxu0 0
    %535 = vmatmul.mubr.bf16.gmra.mxu0 %v500
    %v536 = vpop.f32.mrf.mxu0
    %v537 = vadd.f32 0.0, %v536
    %v538 = vpop.f32.mrf.mxu0
    %v539 = vpop.f32.mrf.mxu0
    %v540 = vpop.f32.mrf.mxu0
    %541 = vdwg.mxu0
    %v542 = vadd.f32 %v317, %v537
    %v543 = vxor.u32 %v542, 2147483648
    %v544 = vmul.f32 %v543, 1.442695
    %v545 = vpow.pop %v544
    %v546 = vadd.f32 %v545, 1.0
    %v547 = vrcp.pop %v546
    %v548 = vmul.f32 1.0, %v547
    %v549 = vtanh.pop %v542
    %v550 = vmul.f32 %v548, %v488
    %552 = vrot.lane.b32.xlu0 %v549, 64
    %v553 = vpop.permute.xlu0 %552
    %v555 = vmul.f32 %v548, %v553
    %557 = vrot.lane.b32.xlu0 %v555, 32
    %v558 = vpop.permute.xlu0 %557
    %v560 = vadd.f32 %v550, %v558
    %v561 = vtanh.pop %v560
    %563 = vrot.lane.b32.xlu0 %v561, 64
    %v564 = vpop.permute.xlu0 %563
    %v566 = vmul.f32 %v548, %v564
    %v567 = vpack.c.bf16 %v566, %v566
    %569 = vrot.lane.b32.xlu0 %v567, 32
    %v570 = vpop.permute.xlu0 %569
    %v572 = vsel %vm261, %v570, 0
    %574 = vmatprep.subr.bf16.mxu0 0
    %575 = vmatpush1.bf16.msra.mxu0 0
    %576 = vmatprep.subr.bf16.mxu0 0
    %577 = vmatpush1.bf16.msra.mxu0 0
    %578 = vmatprep.subr.bf16.mxu0 0
    %579 = vmatpush1.bf16.msra.mxu0 0
    %580 = vmatprep.subr.bf16.mxu0 0
    %581 = vmatpush1.bf16.msra.mxu0 0
    %582 = vmatprep.subr.bf16.mxu0 0
    %583 = vmatpush1.bf16.msra.mxu0 0
    %584 = vmatprep.subr.bf16.mxu0 0
    %585 = vmatpush1.bf16.msra.mxu0 0
    %586 = vmatprep.subr.bf16.mxu0 0
    %587 = vmatpush1.bf16.msra.mxu0 %v352
    %588 = vmatprep.subr.bf16.mxu0 0
    %589 = vmatpush1.bf16.msra.mxu0 %v351
    %590 = vmatprep.subr.bf16.mxu0 0
    %591 = vmatpush2.bf16.msra.mxu0 0
    %592 = vmatprep.subr.bf16.mxu0 0
    %593 = vmatpush2.bf16.msra.mxu0 0
    %594 = vmatprep.subr.bf16.mxu0 0
    %595 = vmatpush2.bf16.msra.mxu0 0
    %596 = vmatprep.subr.bf16.mxu0 0
    %597 = vmatpush2.bf16.msra.mxu0 0
    %598 = vmatprep.subr.bf16.mxu0 0
    %599 = vmatpush2.bf16.msra.mxu0 0
    %600 = vmatprep.subr.bf16.mxu0 0
    %601 = vmatpush2.bf16.msra.mxu0 0
    %602 = vmatprep.subr.bf16.mxu0 0
    %603 = vmatpush2.bf16.msra.mxu0 0
    %604 = vmatprep.subr.bf16.mxu0 0
    %605 = vmatpush2.bf16.msra.mxu0 0
    %606 = vmatprep.mubr.bf16.mxu0 0
    %607 = vmatmul.mubr.bf16.gmra.mxu0 %v572
    %v608 = vpop.f32.mrf.mxu0
    %v609 = vadd.f32 0.0, %v608
    %v610 = vpop.f32.mrf.mxu0
    %v611 = vpop.f32.mrf.mxu0
    %v612 = vpop.f32.mrf.mxu0
    %613 = vdwg.mxu0
    %v614 = vadd.f32 %v320, %v609
    %v615 = vxor.u32 %v614, 2147483648
    %v616 = vmul.f32 %v615, 1.442695
    %v617 = vpow.pop %v616
    %v618 = vadd.f32 %v617, 1.0
    %v619 = vrcp.pop %v618
    %v620 = vmul.f32 1.0, %v619
    %v621 = vtanh.pop %v614
    %v622 = vmul.f32 %v620, %v560
    %624 = vrot.lane.b32.xlu0 %v621, 64
    %v625 = vpop.permute.xlu0 %624
    %v627 = vmul.f32 %v620, %v625
    %629 = vrot.lane.b32.xlu0 %v627, 32
    %v630 = vpop.permute.xlu0 %629
    %v632 = vadd.f32 %v622, %v630
    %v633 = vtanh.pop %v632
    %635 = vrot.lane.b32.xlu0 %v633, 64
    %v636 = vpop.permute.xlu0 %635
    %v638 = vmul.f32 %v620, %v636
    %v639 = vpack.c.bf16 %v638, %v638
    %641 = vrot.lane.b32.xlu0 %v639, 32
    %v642 = vpop.permute.xlu0 %641
    %v644 = vsel %vm261, %v642, 0
    %646 = vmatprep.subr.bf16.mxu0 0
    %647 = vmatpush1.bf16.msra.mxu0 0
    %648 = vmatprep.subr.bf16.mxu0 0
    %649 = vmatpush1.bf16.msra.mxu0 0
    %650 = vmatprep.subr.bf16.mxu0 0
    %651 = vmatpush1.bf16.msra.mxu0 0
    %652 = vmatprep.subr.bf16.mxu0 0
    %653 = vmatpush1.bf16.msra.mxu0 0
    %654 = vmatprep.subr.bf16.mxu0 0
    %655 = vmatpush1.bf16.msra.mxu0 0
    %656 = vmatprep.subr.bf16.mxu0 0
    %657 = vmatpush1.bf16.msra.mxu0 0
    %658 = vmatprep.subr.bf16.mxu0 0
    %659 = vmatpush1.bf16.msra.mxu0 %v352
    %660 = vmatprep.subr.bf16.mxu0 0
    %661 = vmatpush1.bf16.msra.mxu0 %v351
    %662 = vmatprep.subr.bf16.mxu0 0
    %663 = vmatpush2.bf16.msra.mxu0 0
    %664 = vmatprep.subr.bf16.mxu0 0
    %665 = vmatpush2.bf16.msra.mxu0 0
    %666 = vmatprep.subr.bf16.mxu0 0
    %667 = vmatpush2.bf16.msra.mxu0 0
    %668 = vmatprep.subr.bf16.mxu0 0
    %669 = vmatpush2.bf16.msra.mxu0 0
    %670 = vmatprep.subr.bf16.mxu0 0
    %671 = vmatpush2.bf16.msra.mxu0 0
    %672 = vmatprep.subr.bf16.mxu0 0
    %673 = vmatpush2.bf16.msra.mxu0 0
    %674 = vmatprep.subr.bf16.mxu0 0
    %675 = vmatpush2.bf16.msra.mxu0 0
    %676 = vmatprep.subr.bf16.mxu0 0
    %677 = vmatpush2.bf16.msra.mxu0 0
    %678 = vmatprep.mubr.bf16.mxu0 0
    %679 = vmatmul.mubr.bf16.gmra.mxu0 %v644
    %v680 = vpop.f32.mrf.mxu0
    %v681 = vadd.f32 0.0, %v680
    %v682 = vpop.f32.mrf.mxu0
    %v683 = vpop.f32.mrf.mxu0
    %v684 = vpop.f32.mrf.mxu0
    %685 = vdwg.mxu0
    %v686 = vadd.f32 %v325, %v681
    %v687 = vxor.u32 %v686, 2147483648
    %v688 = vmul.f32 %v687, 1.442695
    %v689 = vpow.pop %v688
    %v690 = vadd.f32 %v689, 1.0
    %v691 = vrcp.pop %v690
    %v692 = vmul.f32 1.0, %v691
    %v693 = vtanh.pop %v686
    %v694 = vmul.f32 %v692, %v632
    %696 = vrot.lane.b32.xlu0 %v693, 64
    %v697 = vpop.permute.xlu0 %696
    %v699 = vmul.f32 %v692, %v697
    %701 = vrot.lane.b32.xlu0 %v699, 32
    %v702 = vpop.permute.xlu0 %701
    %v704 = vadd.f32 %v694, %v702
    %v705 = vtanh.pop %v704
    %707 = vrot.lane.b32.xlu0 %v705, 64
    %v708 = vpop.permute.xlu0 %707
    %v710 = vmul.f32 %v692, %v708
    %v711 = vpack.c.bf16 %v710, %v710
    %713 = vrot.lane.b32.xlu0 %v711, 32
    %v714 = vpop.permute.xlu0 %713
    %v716 = vsel %vm261, %v714, 0
    %718 = vmatprep.subr.bf16.mxu0 0
    %719 = vmatpush1.bf16.msra.mxu0 0
    %720 = vmatprep.subr.bf16.mxu0 0
    %721 = vmatpush1.bf16.msra.mxu0 0
    %722 = vmatprep.subr.bf16.mxu0 0
    %723 = vmatpush1.bf16.msra.mxu0 0
    %724 = vmatprep.subr.bf16.mxu0 0
    %725 = vmatpush1.bf16.msra.mxu0 0
    %726 = vmatprep.subr.bf16.mxu0 0
    %727 = vmatpush1.bf16.msra.mxu0 0
    %728 = vmatprep.subr.bf16.mxu0 0
    %729 = vmatpush1.bf16.msra.mxu0 0
    %730 = vmatprep.subr.bf16.mxu0 0
    %731 = vmatpush1.bf16.msra.mxu0 %v352
    %732 = vmatprep.subr.bf16.mxu0 0
    %733 = vmatpush1.bf16.msra.mxu0 %v351
    %734 = vmatprep.subr.bf16.mxu0 0
    %735 = vmatpush2.bf16.msra.mxu0 0
    %736 = vmatprep.subr.bf16.mxu0 0
    %737 = vmatpush2.bf16.msra.mxu0 0
    %738 = vmatprep.subr.bf16.mxu0 0
    %739 = vmatpush2.bf16.msra.mxu0 0
    %740 = vmatprep.subr.bf16.mxu0 0
    %741 = vmatpush2.bf16.msra.mxu0 0
    %742 = vmatprep.subr.bf16.mxu0 0
    %743 = vmatpush2.bf16.msra.mxu0 0
    %744 = vmatprep.subr.bf16.mxu0 0
    %745 = vmatpush2.bf16.msra.mxu0 0
    %746 = vmatprep.subr.bf16.mxu0 0
    %747 = vmatpush2.bf16.msra.mxu0 0
    %748 = vmatprep.subr.bf16.mxu0 0
    %749 = vmatpush2.bf16.msra.mxu0 0
    %750 = vmatprep.mubr.bf16.mxu0 0
    %751 = vmatmul.mubr.bf16.gmra.mxu0 %v716
    %v752 = vpop.f32.mrf.mxu0
    %v753 = vadd.f32 0.0, %v752
    %v754 = vpop.f32.mrf.mxu0
    %v755 = vpop.f32.mrf.mxu0
    %v756 = vpop.f32.mrf.mxu0
    %757 = vdwg.mxu0
    %v758 = vadd.f32 %v328, %v753
    %v759 = vxor.u32 %v758, 2147483648
    %v760 = vmul.f32 %v759, 1.442695
    %v761 = vpow.pop %v760
    %v762 = vadd.f32 %v761, 1.0
    %v763 = vrcp.pop %v762
    %v764 = vmul.f32 1.0, %v763
    %v765 = vtanh.pop %v758
    %v766 = vmul.f32 %v764, %v704
    %768 = vrot.lane.b32.xlu0 %v765, 64
    %v769 = vpop.permute.xlu0 %768
    %v771 = vmul.f32 %v764, %v769
    %773 = vrot.lane.b32.xlu0 %v771, 32
    %v774 = vpop.permute.xlu0 %773
    %v776 = vadd.f32 %v766, %v774
    %v777 = vtanh.pop %v776
    %779 = vrot.lane.b32.xlu0 %v777, 64
    %v780 = vpop.permute.xlu0 %779
    %v782 = vmul.f32 %v764, %v780
    %v783 = vpack.c.bf16 %v782, %v782
    %785 = vrot.lane.b32.xlu0 %v783, 32
    %v786 = vpop.permute.xlu0 %785
    %v788 = vsel %vm261, %v786, 0
    %790 = vmatprep.subr.bf16.mxu0 0
    %791 = vmatpush1.bf16.msra.mxu0 0
    %792 = vmatprep.subr.bf16.mxu0 0
    %793 = vmatpush1.bf16.msra.mxu0 0
    %794 = vmatprep.subr.bf16.mxu0 0
    %795 = vmatpush1.bf16.msra.mxu0 0
    %796 = vmatprep.subr.bf16.mxu0 0
    %797 = vmatpush1.bf16.msra.mxu0 0
    %798 = vmatprep.subr.bf16.mxu0 0
    %799 = vmatpush1.bf16.msra.mxu0 0
    %800 = vmatprep.subr.bf16.mxu0 0
    %801 = vmatpush1.bf16.msra.mxu0 0
    %802 = vmatprep.subr.bf16.mxu0 0
    %803 = vmatpush1.bf16.msra.mxu0 %v352
    %804 = vmatprep.subr.bf16.mxu0 0
    %805 = vmatpush1.bf16.msra.mxu0 %v351
    %806 = vmatprep.subr.bf16.mxu0 0
    %807 = vmatpush2.bf16.msra.mxu0 0
    %808 = vmatprep.subr.bf16.mxu0 0
    %809 = vmatpush2.bf16.msra.mxu0 0
    %810 = vmatprep.subr.bf16.mxu0 0
    %811 = vmatpush2.bf16.msra.mxu0 0
    %812 = vmatprep.subr.bf16.mxu0 0
    %813 = vmatpush2.bf16.msra.mxu0 0
    %814 = vmatprep.subr.bf16.mxu0 0
    %815 = vmatpush2.bf16.msra.mxu0 0
    %816 = vmatprep.subr.bf16.mxu0 0
    %817 = vmatpush2.bf16.msra.mxu0 0
    %818 = vmatprep.subr.bf16.mxu0 0
    %819 = vmatpush2.bf16.msra.mxu0 0
    %820 = vmatprep.subr.bf16.mxu0 0
    %821 = vmatpush2.bf16.msra.mxu0 0
    %822 = vmatprep.mubr.bf16.mxu0 0
    %823 = vmatmul.mubr.bf16.gmra.mxu0 %v788
    %v824 = vpop.f32.mrf.mxu0
    %v825 = vadd.f32 0.0, %v824
    %v826 = vpop.f32.mrf.mxu0
    %v827 = vpop.f32.mrf.mxu0
    %v828 = vpop.f32.mrf.mxu0
    %829 = vdwg.mxu0
    %v830 = vadd.f32 %v333, %v825
    %v831 = vxor.u32 %v830, 2147483648
    %v832 = vmul.f32 %v831, 1.442695
    %v833 = vpow.pop %v832
    %v834 = vadd.f32 %v833, 1.0
    %v835 = vrcp.pop %v834
    %v836 = vmul.f32 1.0, %v835
    %v837 = vtanh.pop %v830
    %v838 = vmul.f32 %v836, %v776
    %840 = vrot.lane.b32.xlu0 %v837, 64
    %v841 = vpop.permute.xlu0 %840
    %v843 = vmul.f32 %v836, %v841
    %845 = vrot.lane.b32.xlu0 %v843, 32
    %v846 = vpop.permute.xlu0 %845
    %v848 = vadd.f32 %v838, %v846
    %v849 = vtanh.pop %v848
    %851 = vrot.lane.b32.xlu0 %v849, 64
    %v852 = vpop.permute.xlu0 %851
    %v854 = vmul.f32 %v836, %v852
    %v855 = vpack.c.bf16 %v854, %v854
    %857 = vrot.lane.b32.xlu0 %v855, 32
    %v858 = vpop.permute.xlu0 %857
    %v860 = vsel %vm261, %v858, 0
    %862 = vmatprep.subr.bf16.mxu0 0
    %863 = vmatpush1.bf16.msra.mxu0 0
    %864 = vmatprep.subr.bf16.mxu0 0
    %865 = vmatpush1.bf16.msra.mxu0 0
    %866 = vmatprep.subr.bf16.mxu0 0
    %867 = vmatpush1.bf16.msra.mxu0 0
    %868 = vmatprep.subr.bf16.mxu0 0
    %869 = vmatpush1.bf16.msra.mxu0 0
    %870 = vmatprep.subr.bf16.mxu0 0
    %871 = vmatpush1.bf16.msra.mxu0 0
    %872 = vmatprep.subr.bf16.mxu0 0
    %873 = vmatpush1.bf16.msra.mxu0 0
    %874 = vmatprep.subr.bf16.mxu0 0
    %875 = vmatpush1.bf16.msra.mxu0 %v352
    %876 = vmatprep.subr.bf16.mxu0 0
    %877 = vmatpush1.bf16.msra.mxu0 %v351
    %878 = vmatprep.subr.bf16.mxu0 0
    %879 = vmatpush2.bf16.msra.mxu0 0
    %880 = vmatprep.subr.bf16.mxu0 0
    %881 = vmatpush2.bf16.msra.mxu0 0
    %882 = vmatprep.subr.bf16.mxu0 0
    %883 = vmatpush2.bf16.msra.mxu0 0
    %884 = vmatprep.subr.bf16.mxu0 0
    %885 = vmatpush2.bf16.msra.mxu0 0
    %886 = vmatprep.subr.bf16.mxu0 0
    %887 = vmatpush2.bf16.msra.mxu0 0
    %888 = vmatprep.subr.bf16.mxu0 0
    %889 = vmatpush2.bf16.msra.mxu0 0
    %890 = vmatprep.subr.bf16.mxu0 0
    %891 = vmatpush2.bf16.msra.mxu0 0
    %892 = vmatprep.subr.bf16.mxu0 0
    %893 = vmatpush2.bf16.msra.mxu0 0
    %894 = vmatprep.mubr.bf16.mxu0 0
    %895 = vmatmul.mubr.bf16.gmra.mxu0 %v860
    %v896 = vpop.f32.mrf.mxu0
    %v897 = vadd.f32 0.0, %v896
    %v898 = vpop.f32.mrf.mxu0
    %v899 = vpop.f32.mrf.mxu0
    %v900 = vpop.f32.mrf.mxu0
    %901 = vdwg.mxu0
    %v902 = vadd.f32 %v336, %v897
    %v903 = vxor.u32 %v902, 2147483648
    %v904 = vmul.f32 %v903, 1.442695
    %v905 = vpow.pop %v904
    %v906 = vadd.f32 %v905, 1.0
    %v907 = vrcp.pop %v906
    %v908 = vmul.f32 1.0, %v907
    %v909 = vtanh.pop %v902
    %v910 = vmul.f32 %v908, %v848
    %912 = vrot.lane.b32.xlu0 %v909, 64
    %v913 = vpop.permute.xlu0 %912
    %v915 = vmul.f32 %v908, %v913
    %917 = vrot.lane.b32.xlu0 %v915, 32
    %v918 = vpop.permute.xlu0 %917
    %v920 = vadd.f32 %v910, %v918
    %v921 = vtanh.pop %v920
    %923 = vrot.lane.b32.xlu0 %v921, 64
    %v924 = vpop.permute.xlu0 %923
    %v926 = vmul.f32 %v908, %v924
    %v927 = vpack.c.bf16 %v494, %v422
    %v928 = vpack.c.bf16 %v638, %v566
    %v929 = vpack.c.bf16 %v782, %v710
    %v930 = vpack.c.bf16 %v926, %v854
    %v931 = vld [vmem:[%s5] sm:$0xf]
    %v932 = vld [vmem:[%s5 + $0x4] sm:$0xf]
    %v933 = vld [vmem:[%s5 + $0x8] sm:$0xf]
    %v934 = vld [vmem:[%s5 + $0xc] sm:$0xf]
    %v935 = vld [vmem:[%s7] sm:$0x1]
    %v937 = vlaneseq
    %v938 = vshrl.u32 %v937, 7
    %v939 = vsub.s32 0, %v938
    %v940 = vrot.slane %v935, %v939
    %946 = vrot.lane.b32.xlu0 %v927, 32
    %v947 = vpop.permute.xlu0 %946
    %948 = vrot.lane.b32.xlu0 %v928, 32
    %v949 = vpop.permute.xlu0 %948
    %950 = vrot.lane.b32.xlu0 %v929, 32
    %v951 = vpop.permute.xlu0 %950
    %952 = vrot.lane.b32.xlu0 %v930, 32
    %v953 = vpop.permute.xlu0 %952
    %v958 = vunpack.c.l.b16 %v931
    %v959 = vunpack.c.l.b16 %v932
    %v960 = vunpack.c.l.b16 %v933
    %v961 = vunpack.c.l.b16 %v934
    %v962 = vpack.c.b16 %v959, %v958
    %v963 = vpack.c.b16 %v961, %v960
    %v967 = vsel %vm261, %v947, 0
    %v970 = vsel %vm261, %v949, 0
    %v973 = vsel %vm261, %v951, 0
    %v976 = vsel %vm261, %v953, 0
    %978 = vmatprep.subr.bf16.mxu0 0
    %979 = vmatpush1.bf16.msra.mxu0 0
    %980 = vmatprep.subr.bf16.mxu0 0
    %981 = vmatpush1.bf16.msra.mxu0 0
    %982 = vmatprep.subr.bf16.mxu0 0
    %983 = vmatpush1.bf16.msra.mxu0 0
    %984 = vmatprep.subr.bf16.mxu0 0
    %985 = vmatpush1.bf16.msra.mxu0 0
    %986 = vmatprep.subr.bf16.mxu0 0
    %987 = vmatpush1.bf16.msra.mxu0 0
    %988 = vmatprep.subr.bf16.mxu0 0
    %989 = vmatpush1.bf16.msra.mxu0 0
    %990 = vmatprep.subr.bf16.mxu0 0
    %991 = vmatpush1.bf16.msra.mxu0 %v963
    %992 = vmatprep.subr.bf16.mxu0 0
    %993 = vmatpush1.bf16.msra.mxu0 %v962
    %994 = vmatprep.subr.bf16.mxu0 0
    %995 = vmatpush2.bf16.msra.mxu0 0
    %996 = vmatprep.subr.bf16.mxu0 0
    %997 = vmatpush2.bf16.msra.mxu0 0
    %998 = vmatprep.subr.bf16.mxu0 0
    %999 = vmatpush2.bf16.msra.mxu0 0
    %1000 = vmatprep.subr.bf16.mxu0 0
    %1001 = vmatpush2.bf16.msra.mxu0 0
    %1002 = vmatprep.subr.bf16.mxu0 0
    %1003 = vmatpush2.bf16.msra.mxu0 0
    %1004 = vmatprep.subr.bf16.mxu0 0
    %1005 = vmatpush2.bf16.msra.mxu0 0
    %1006 = vmatprep.subr.bf16.mxu0 0
    %1007 = vmatpush2.bf16.msra.mxu0 0
    %1008 = vmatprep.subr.bf16.mxu0 0
    %1009 = vmatpush2.bf16.msra.mxu0 0
    %1010 = vmatprep.mubr.bf16.mxu0 0
    %1011 = vmatmul.mubr.bf16.gmra.mxu0 %v967
    %v1012 = vpop.f32.mrf.mxu0
    %v1013 = vadd.f32 %v940, %v1012
    %v1014 = vpop.f32.mrf.mxu0
    %v1015 = vpop.f32.mrf.mxu0
    %v1016 = vadd.f32 %v940, %v1015
    %v1017 = vpop.f32.mrf.mxu0
    %1018 = vmatprep.mubr.bf16.mxu0 0
    %1019 = vmatmul.mubr.bf16.gmra.mxu0 %v970
    %v1020 = vpop.f32.mrf.mxu0
    %v1021 = vadd.f32 %v940, %v1020
    %v1022 = vpop.f32.mrf.mxu0
    %v1023 = vpop.f32.mrf.mxu0
    %v1024 = vadd.f32 %v940, %v1023
    %v1025 = vpop.f32.mrf.mxu0
    %1026 = vmatprep.mubr.bf16.mxu0 0
    %1027 = vmatmul.mubr.bf16.gmra.mxu0 %v973
    %v1028 = vpop.f32.mrf.mxu0
    %v1029 = vadd.f32 %v940, %v1028
    %v1030 = vpop.f32.mrf.mxu0
    %v1031 = vpop.f32.mrf.mxu0
    %v1032 = vadd.f32 %v940, %v1031
    %v1033 = vpop.f32.mrf.mxu0
    %1034 = vmatprep.mubr.bf16.mxu0 0
    %1035 = vmatmul.mubr.bf16.gmra.mxu0 %v976
    %v1036 = vpop.f32.mrf.mxu0
    %v1037 = vadd.f32 %v940, %v1036
    %v1038 = vpop.f32.mrf.mxu0
    %v1039 = vpop.f32.mrf.mxu0
    %v1040 = vadd.f32 %v940, %v1039
    %v1041 = vpop.f32.mrf.mxu0
    %1042 = vdwg.mxu0
    %v1043 = vld [vmem:[%s6] sm:$0xf]
    %v1044 = vld [vmem:[%s6 + $0x4] sm:$0xf]
    %v1045 = vld [vmem:[%s6 + $0x8] sm:$0xf]
    %v1046 = vld [vmem:[%s6 + $0xc] sm:$0xf]
    %v1051 = vunpack.c.l.b16 %v1043
    %v1052 = vunpack.c.l.b16 %v1044
    %v1053 = vunpack.c.l.b16 %v1045
    %v1054 = vunpack.c.l.b16 %v1046
    %v1055 = vpack.c.b16 %v1052, %v1051
    %v1056 = vpack.c.b16 %v1054, %v1053
    %1059 = vmatprep.subr.bf16.mxu0 0
    %1060 = vmatpush1.bf16.msra.mxu0 0
    %1061 = vmatprep.subr.bf16.mxu0 0
    %1062 = vmatpush1.bf16.msra.mxu0 0
    %1063 = vmatprep.subr.bf16.mxu0 0
    %1064 = vmatpush1.bf16.msra.mxu0 0
    %1065 = vmatprep.subr.bf16.mxu0 0
    %1066 = vmatpush1.bf16.msra.mxu0 0
    %1067 = vmatprep.subr.bf16.mxu0 0
    %1068 = vmatpush1.bf16.msra.mxu0 0
    %1069 = vmatprep.subr.bf16.mxu0 0
    %1070 = vmatpush1.bf16.msra.mxu0 0
    %1071 = vmatprep.subr.bf16.mxu0 0
    %1072 = vmatpush1.bf16.msra.mxu0 %v1056
    %1073 = vmatprep.subr.bf16.mxu0 0
    %1074 = vmatpush1.bf16.msra.mxu0 %v1055
    %1075 = vmatprep.subr.bf16.mxu0 0
    %1076 = vmatpush2.bf16.msra.mxu0 0
    %1077 = vmatprep.subr.bf16.mxu0 0
    %1078 = vmatpush2.bf16.msra.mxu0 0
    %1079 = vmatprep.subr.bf16.mxu0 0
    %1080 = vmatpush2.bf16.msra.mxu0 0
    %1081 = vmatprep.subr.bf16.mxu0 0
    %1082 = vmatpush2.bf16.msra.mxu0 0
    %1083 = vmatprep.subr.bf16.mxu0 0
    %1084 = vmatpush2.bf16.msra.mxu0 0
    %1085 = vmatprep.subr.bf16.mxu0 0
    %1086 = vmatpush2.bf16.msra.mxu0 0
    %1087 = vmatprep.subr.bf16.mxu0 0
    %1088 = vmatpush2.bf16.msra.mxu0 0
    %1089 = vmatprep.subr.bf16.mxu0 0
    %1090 = vmatpush2.bf16.msra.mxu0 0
    %1091 = vmatprep.mubr.bf16.mxu0 0
    %1092 = vmatmul.mubr.bf16.gmra.mxu0 %v356
    %v1093 = vpop.f32.mrf.mxu0
    %v1094 = vadd.f32 0.0, %v1093
    %v1095 = vpop.f32.mrf.mxu0
    %v1096 = vpop.f32.mrf.mxu0
    %v1097 = vpop.f32.mrf.mxu0
    %1098 = vdwg.mxu0
    %v1099 = vadd.f32 %v1013, %v1094
    %v1100 = vxor.u32 %v1099, 2147483648
    %v1101 = vmul.f32 %v1100, 1.442695
    %v1102 = vpow.pop %v1101
    %v1103 = vadd.f32 %v1102, 1.0
    %v1104 = vrcp.pop %v1103
    %v1105 = vmul.f32 1.0, %v1104
    %v1106 = vtanh.pop %v1099
    %v1107 = vmul.f32 %v1105, 0.0
    %1109 = vrot.lane.b32.xlu0 %v1106, 64
    %v1110 = vpop.permute.xlu0 %1109
    %v1112 = vmul.f32 %v1105, %v1110
    %1114 = vrot.lane.b32.xlu0 %v1112, 32
    %v1115 = vpop.permute.xlu0 %1114
    %v1117 = vadd.f32 %v1107, %v1115
    %v1118 = vtanh.pop %v1117
    %1120 = vrot.lane.b32.xlu0 %v1118, 64
    %v1121 = vpop.permute.xlu0 %1120
    %v1123 = vmul.f32 %v1105, %v1121
    %v1124 = vpack.c.bf16 %v1123, %v1123
    %1126 = vrot.lane.b32.xlu0 %v1124, 32
    %v1127 = vpop.permute.xlu0 %1126
    %v1129 = vsel %vm261, %v1127, 0
    %1131 = vmatprep.subr.bf16.mxu0 0
    %1132 = vmatpush1.bf16.msra.mxu0 0
    %1133 = vmatprep.subr.bf16.mxu0 0
    %1134 = vmatpush1.bf16.msra.mxu0 0
    %1135 = vmatprep.subr.bf16.mxu0 0
    %1136 = vmatpush1.bf16.msra.mxu0 0
    %1137 = vmatprep.subr.bf16.mxu0 0
    %1138 = vmatpush1.bf16.msra.mxu0 0
    %1139 = vmatprep.subr.bf16.mxu0 0
    %1140 = vmatpush1.bf16.msra.mxu0 0
    %1141 = vmatprep.subr.bf16.mxu0 0
    %1142 = vmatpush1.bf16.msra.mxu0 0
    %1143 = vmatprep.subr.bf16.mxu0 0
    %1144 = vmatpush1.bf16.msra.mxu0 %v1056
    %1145 = vmatprep.subr.bf16.mxu0 0
    %1146 = vmatpush1.bf16.msra.mxu0 %v1055
    %1147 = vmatprep.subr.bf16.mxu0 0
    %1148 = vmatpush2.bf16.msra.mxu0 0
    %1149 = vmatprep.subr.bf16.mxu0 0
    %1150 = vmatpush2.bf16.msra.mxu0 0
    %1151 = vmatprep.subr.bf16.mxu0 0
    %1152 = vmatpush2.bf16.msra.mxu0 0
    %1153 = vmatprep.subr.bf16.mxu0 0
    %1154 = vmatpush2.bf16.msra.mxu0 0
    %1155 = vmatprep.subr.bf16.mxu0 0
    %1156 = vmatpush2.bf16.msra.mxu0 0
    %1157 = vmatprep.subr.bf16.mxu0 0
    %1158 = vmatpush2.bf16.msra.mxu0 0
    %1159 = vmatprep.subr.bf16.mxu0 0
    %1160 = vmatpush2.bf16.msra.mxu0 0
    %1161 = vmatprep.subr.bf16.mxu0 0
    %1162 = vmatpush2.bf16.msra.mxu0 0
    %1163 = vmatprep.mubr.bf16.mxu0 0
    %1164 = vmatmul.mubr.bf16.gmra.mxu0 %v1129
    %v1165 = vpop.f32.mrf.mxu0
    %v1166 = vadd.f32 0.0, %v1165
    %v1167 = vpop.f32.mrf.mxu0
    %v1168 = vpop.f32.mrf.mxu0
    %v1169 = vpop.f32.mrf.mxu0
    %1170 = vdwg.mxu0
    %v1171 = vadd.f32 %v1016, %v1166
    %v1172 = vxor.u32 %v1171, 2147483648
    %v1173 = vmul.f32 %v1172, 1.442695
    %v1174 = vpow.pop %v1173
    %v1175 = vadd.f32 %v1174, 1.0
    %v1176 = vrcp.pop %v1175
    %v1177 = vmul.f32 1.0, %v1176
    %v1178 = vtanh.pop %v1171
    %v1179 = vmul.f32 %v1177, %v1117
    %1181 = vrot.lane.b32.xlu0 %v1178, 64
    %v1182 = vpop.permute.xlu0 %1181
    %v1184 = vmul.f32 %v1177, %v1182
    %1186 = vrot.lane.b32.xlu0 %v1184, 32
    %v1187 = vpop.permute.xlu0 %1186
    %v1189 = vadd.f32 %v1179, %v1187
    %v1190 = vtanh.pop %v1189
    %1192 = vrot.lane.b32.xlu0 %v1190, 64
    %v1193 = vpop.permute.xlu0 %1192
    %v1195 = vmul.f32 %v1177, %v1193
    %v1196 = vpack.c.bf16 %v1195, %v1195
    %1198 = vrot.lane.b32.xlu0 %v1196, 32
    %v1199 = vpop.permute.xlu0 %1198
    %v1201 = vsel %vm261, %v1199, 0
    %1203 = vmatprep.subr.bf16.mxu0 0
    %1204 = vmatpush1.bf16.msra.mxu0 0
    %1205 = vmatprep.subr.bf16.mxu0 0
    %1206 = vmatpush1.bf16.msra.mxu0 0
    %1207 = vmatprep.subr.bf16.mxu0 0
    %1208 = vmatpush1.bf16.msra.mxu0 0
    %1209 = vmatprep.subr.bf16.mxu0 0
    %1210 = vmatpush1.bf16.msra.mxu0 0
    %1211 = vmatprep.subr.bf16.mxu0 0
    %1212 = vmatpush1.bf16.msra.mxu0 0
    %1213 = vmatprep.subr.bf16.mxu0 0
    %1214 = vmatpush1.bf16.msra.mxu0 0
    %1215 = vmatprep.subr.bf16.mxu0 0
    %1216 = vmatpush1.bf16.msra.mxu0 %v1056
    %1217 = vmatprep.subr.bf16.mxu0 0
    %1218 = vmatpush1.bf16.msra.mxu0 %v1055
    %1219 = vmatprep.subr.bf16.mxu0 0
    %1220 = vmatpush2.bf16.msra.mxu0 0
    %1221 = vmatprep.subr.bf16.mxu0 0
    %1222 = vmatpush2.bf16.msra.mxu0 0
    %1223 = vmatprep.subr.bf16.mxu0 0
    %1224 = vmatpush2.bf16.msra.mxu0 0
    %1225 = vmatprep.subr.bf16.mxu0 0
    %1226 = vmatpush2.bf16.msra.mxu0 0
    %1227 = vmatprep.subr.bf16.mxu0 0
    %1228 = vmatpush2.bf16.msra.mxu0 0
    %1229 = vmatprep.subr.bf16.mxu0 0
    %1230 = vmatpush2.bf16.msra.mxu0 0
    %1231 = vmatprep.subr.bf16.mxu0 0
    %1232 = vmatpush2.bf16.msra.mxu0 0
    %1233 = vmatprep.subr.bf16.mxu0 0
    %1234 = vmatpush2.bf16.msra.mxu0 0
    %1235 = vmatprep.mubr.bf16.mxu0 0
    %1236 = vmatmul.mubr.bf16.gmra.mxu0 %v1201
    %v1237 = vpop.f32.mrf.mxu0
    %v1238 = vadd.f32 0.0, %v1237
    %v1239 = vpop.f32.mrf.mxu0
    %v1240 = vpop.f32.mrf.mxu0
    %v1241 = vpop.f32.mrf.mxu0
    %1242 = vdwg.mxu0
    %v1243 = vadd.f32 %v1021, %v1238
    %v1244 = vxor.u32 %v1243, 2147483648
    %v1245 = vmul.f32 %v1244, 1.442695
    %v1246 = vpow.pop %v1245
    %v1247 = vadd.f32 %v1246, 1.0
    %v1248 = vrcp.pop %v1247
    %v1249 = vmul.f32 1.0, %v1248
    %v1250 = vtanh.pop %v1243
    %v1251 = vmul.f32 %v1249, %v1189
    %1253 = vrot.lane.b32.xlu0 %v1250, 64
    %v1254 = vpop.permute.xlu0 %1253
    %v1256 = vmul.f32 %v1249, %v1254
    %1258 = vrot.lane.b32.xlu0 %v1256, 32
    %v1259 = vpop.permute.xlu0 %1258
    %v1261 = vadd.f32 %v1251, %v1259
    %v1262 = vtanh.pop %v1261
    %1264 = vrot.lane.b32.xlu0 %v1262, 64
    %v1265 = vpop.permute.xlu0 %1264
    %v1267 = vmul.f32 %v1249, %v1265
    %v1268 = vpack.c.bf16 %v1267, %v1267
    %1270 = vrot.lane.b32.xlu0 %v1268, 32
    %v1271 = vpop.permute.xlu0 %1270
    %v1273 = vsel %vm261, %v1271, 0
    %1275 = vmatprep.subr.bf16.mxu0 0
    %1276 = vmatpush1.bf16.msra.mxu0 0
    %1277 = vmatprep.subr.bf16.mxu0 0
    %1278 = vmatpush1.bf16.msra.mxu0 0
    %1279 = vmatprep.subr.bf16.mxu0 0
    %1280 = vmatpush1.bf16.msra.mxu0 0
    %1281 = vmatprep.subr.bf16.mxu0 0
    %1282 = vmatpush1.bf16.msra.mxu0 0
    %1283 = vmatprep.subr.bf16.mxu0 0
    %1284 = vmatpush1.bf16.msra.mxu0 0
    %1285 = vmatprep.subr.bf16.mxu0 0
    %1286 = vmatpush1.bf16.msra.mxu0 0
    %1287 = vmatprep.subr.bf16.mxu0 0
    %1288 = vmatpush1.bf16.msra.mxu0 %v1056
    %1289 = vmatprep.subr.bf16.mxu0 0
    %1290 = vmatpush1.bf16.msra.mxu0 %v1055
    %1291 = vmatprep.subr.bf16.mxu0 0
    %1292 = vmatpush2.bf16.msra.mxu0 0
    %1293 = vmatprep.subr.bf16.mxu0 0
    %1294 = vmatpush2.bf16.msra.mxu0 0
    %1295 = vmatprep.subr.bf16.mxu0 0
    %1296 = vmatpush2.bf16.msra.mxu0 0
    %1297 = vmatprep.subr.bf16.mxu0 0
    %1298 = vmatpush2.bf16.msra.mxu0 0
    %1299 = vmatprep.subr.bf16.mxu0 0
    %1300 = vmatpush2.bf16.msra.mxu0 0
    %1301 = vmatprep.subr.bf16.mxu0 0
    %1302 = vmatpush2.bf16.msra.mxu0 0
    %1303 = vmatprep.subr.bf16.mxu0 0
    %1304 = vmatpush2.bf16.msra.mxu0 0
    %1305 = vmatprep.subr.bf16.mxu0 0
    %1306 = vmatpush2.bf16.msra.mxu0 0
    %1307 = vmatprep.mubr.bf16.mxu0 0
    %1308 = vmatmul.mubr.bf16.gmra.mxu0 %v1273
    %v1309 = vpop.f32.mrf.mxu0
    %v1310 = vadd.f32 0.0, %v1309
    %v1311 = vpop.f32.mrf.mxu0
    %v1312 = vpop.f32.mrf.mxu0
    %v1313 = vpop.f32.mrf.mxu0
    %1314 = vdwg.mxu0
    %v1315 = vadd.f32 %v1024, %v1310
    %v1316 = vxor.u32 %v1315, 2147483648
    %v1317 = vmul.f32 %v1316, 1.442695
    %v1318 = vpow.pop %v1317
    %v1319 = vadd.f32 %v1318, 1.0
    %v1320 = vrcp.pop %v1319
    %v1321 = vmul.f32 1.0, %v1320
    %v1322 = vtanh.pop %v1315
    %v1323 = vmul.f32 %v1321, %v1261
    %1325 = vrot.lane.b32.xlu0 %v1322, 64
    %v1326 = vpop.permute.xlu0 %1325
    %v1328 = vmul.f32 %v1321, %v1326
    %1330 = vrot.lane.b32.xlu0 %v1328, 32
    %v1331 = vpop.permute.xlu0 %1330
    %v1333 = vadd.f32 %v1323, %v1331
    %v1334 = vtanh.pop %v1333
    %1336 = vrot.lane.b32.xlu0 %v1334, 64
    %v1337 = vpop.permute.xlu0 %1336
    %v1339 = vmul.f32 %v1321, %v1337
    %v1340 = vpack.c.bf16 %v1339, %v1339
    %1342 = vrot.lane.b32.xlu0 %v1340, 32
    %v1343 = vpop.permute.xlu0 %1342
    %v1345 = vsel %vm261, %v1343, 0
    %1347 = vmatprep.subr.bf16.mxu0 0
    %1348 = vmatpush1.bf16.msra.mxu0 0
    %1349 = vmatprep.subr.bf16.mxu0 0
    %1350 = vmatpush1.bf16.msra.mxu0 0
    %1351 = vmatprep.subr.bf16.mxu0 0
    %1352 = vmatpush1.bf16.msra.mxu0 0
    %1353 = vmatprep.subr.bf16.mxu0 0
    %1354 = vmatpush1.bf16.msra.mxu0 0
    %1355 = vmatprep.subr.bf16.mxu0 0
    %1356 = vmatpush1.bf16.msra.mxu0 0
    %1357 = vmatprep.subr.bf16.mxu0 0
    %1358 = vmatpush1.bf16.msra.mxu0 0
    %1359 = vmatprep.subr.bf16.mxu0 0
    %1360 = vmatpush1.bf16.msra.mxu0 %v1056
    %1361 = vmatprep.subr.bf16.mxu0 0
    %1362 = vmatpush1.bf16.msra.mxu0 %v1055
    %1363 = vmatprep.subr.bf16.mxu0 0
    %1364 = vmatpush2.bf16.msra.mxu0 0
    %1365 = vmatprep.subr.bf16.mxu0 0
    %1366 = vmatpush2.bf16.msra.mxu0 0
    %1367 = vmatprep.subr.bf16.mxu0 0
    %1368 = vmatpush2.bf16.msra.mxu0 0
    %1369 = vmatprep.subr.bf16.mxu0 0
    %1370 = vmatpush2.bf16.msra.mxu0 0
    %1371 = vmatprep.subr.bf16.mxu0 0
    %1372 = vmatpush2.bf16.msra.mxu0 0
    %1373 = vmatprep.subr.bf16.mxu0 0
    %1374 = vmatpush2.bf16.msra.mxu0 0
    %1375 = vmatprep.subr.bf16.mxu0 0
    %1376 = vmatpush2.bf16.msra.mxu0 0
    %1377 = vmatprep.subr.bf16.mxu0 0
    %1378 = vmatpush2.bf16.msra.mxu0 0
    %1379 = vmatprep.mubr.bf16.mxu0 0
    %1380 = vmatmul.mubr.bf16.gmra.mxu0 %v1345
    %v1381 = vpop.f32.mrf.mxu0
    %v1382 = vadd.f32 0.0, %v1381
    %v1383 = vpop.f32.mrf.mxu0
    %v1384 = vpop.f32.mrf.mxu0
    %v1385 = vpop.f32.mrf.mxu0
    %1386 = vdwg.mxu0
    %v1387 = vadd.f32 %v1029, %v1382
    %v1388 = vxor.u32 %v1387, 2147483648
    %v1389 = vmul.f32 %v1388, 1.442695
    %v1390 = vpow.pop %v1389
    %v1391 = vadd.f32 %v1390, 1.0
    %v1392 = vrcp.pop %v1391
    %v1393 = vmul.f32 1.0, %v1392
    %v1394 = vtanh.pop %v1387
    %v1395 = vmul.f32 %v1393, %v1333
    %1397 = vrot.lane.b32.xlu0 %v1394, 64
    %v1398 = vpop.permute.xlu0 %1397
    %v1400 = vmul.f32 %v1393, %v1398
    %1402 = vrot.lane.b32.xlu0 %v1400, 32
    %v1403 = vpop.permute.xlu0 %1402
    %v1405 = vadd.f32 %v1395, %v1403
    %v1406 = vtanh.pop %v1405
    %1408 = vrot.lane.b32.xlu0 %v1406, 64
    %v1409 = vpop.permute.xlu0 %1408
    %v1411 = vmul.f32 %v1393, %v1409
    %v1412 = vpack.c.bf16 %v1411, %v1411
    %1414 = vrot.lane.b32.xlu0 %v1412, 32
    %v1415 = vpop.permute.xlu0 %1414
    %v1417 = vsel %vm261, %v1415, 0
    %1419 = vmatprep.subr.bf16.mxu0 0
    %1420 = vmatpush1.bf16.msra.mxu0 0
    %1421 = vmatprep.subr.bf16.mxu0 0
    %1422 = vmatpush1.bf16.msra.mxu0 0
    %1423 = vmatprep.subr.bf16.mxu0 0
    %1424 = vmatpush1.bf16.msra.mxu0 0
    %1425 = vmatprep.subr.bf16.mxu0 0
    %1426 = vmatpush1.bf16.msra.mxu0 0
    %1427 = vmatprep.subr.bf16.mxu0 0
    %1428 = vmatpush1.bf16.msra.mxu0 0
    %1429 = vmatprep.subr.bf16.mxu0 0
    %1430 = vmatpush1.bf16.msra.mxu0 0
    %1431 = vmatprep.subr.bf16.mxu0 0
    %1432 = vmatpush1.bf16.msra.mxu0 %v1056
    %1433 = vmatprep.subr.bf16.mxu0 0
    %1434 = vmatpush1.bf16.msra.mxu0 %v1055
    %1435 = vmatprep.subr.bf16.mxu0 0
    %1436 = vmatpush2.bf16.msra.mxu0 0
    %1437 = vmatprep.subr.bf16.mxu0 0
    %1438 = vmatpush2.bf16.msra.mxu0 0
    %1439 = vmatprep.subr.bf16.mxu0 0
    %1440 = vmatpush2.bf16.msra.mxu0 0
    %1441 = vmatprep.subr.bf16.mxu0 0
    %1442 = vmatpush2.bf16.msra.mxu0 0
    %1443 = vmatprep.subr.bf16.mxu0 0
    %1444 = vmatpush2.bf16.msra.mxu0 0
    %1445 = vmatprep.subr.bf16.mxu0 0
    %1446 = vmatpush2.bf16.msra.mxu0 0
    %1447 = vmatprep.subr.bf16.mxu0 0
    %1448 = vmatpush2.bf16.msra.mxu0 0
    %1449 = vmatprep.subr.bf16.mxu0 0
    %1450 = vmatpush2.bf16.msra.mxu0 0
    %1451 = vmatprep.mubr.bf16.mxu0 0
    %1452 = vmatmul.mubr.bf16.gmra.mxu0 %v1417
    %v1453 = vpop.f32.mrf.mxu0
    %v1454 = vadd.f32 0.0, %v1453
    %v1455 = vpop.f32.mrf.mxu0
    %v1456 = vpop.f32.mrf.mxu0
    %v1457 = vpop.f32.mrf.mxu0
    %1458 = vdwg.mxu0
    %v1459 = vadd.f32 %v1032, %v1454
    %v1460 = vxor.u32 %v1459, 2147483648
    %v1461 = vmul.f32 %v1460, 1.442695
    %v1462 = vpow.pop %v1461
    %v1463 = vadd.f32 %v1462, 1.0
    %v1464 = vrcp.pop %v1463
    %v1465 = vmul.f32 1.0, %v1464
    %v1466 = vtanh.pop %v1459
    %v1467 = vmul.f32 %v1465, %v1405
    %1469 = vrot.lane.b32.xlu0 %v1466, 64
    %v1470 = vpop.permute.xlu0 %1469
    %v1472 = vmul.f32 %v1465, %v1470
    %1474 = vrot.lane.b32.xlu0 %v1472, 32
    %v1475 = vpop.permute.xlu0 %1474
    %v1477 = vadd.f32 %v1467, %v1475
    %v1478 = vtanh.pop %v1477
    %1480 = vrot.lane.b32.xlu0 %v1478, 64
    %v1481 = vpop.permute.xlu0 %1480
    %v1483 = vmul.f32 %v1465, %v1481
    %v1484 = vpack.c.bf16 %v1483, %v1483
    %1486 = vrot.lane.b32.xlu0 %v1484, 32
    %v1487 = vpop.permute.xlu0 %1486
    %v1489 = vsel %vm261, %v1487, 0
    %1491 = vmatprep.subr.bf16.mxu0 0
    %1492 = vmatpush1.bf16.msra.mxu0 0
    %1493 = vmatprep.subr.bf16.mxu0 0
    %1494 = vmatpush1.bf16.msra.mxu0 0
    %1495 = vmatprep.subr.bf16.mxu0 0
    %1496 = vmatpush1.bf16.msra.mxu0 0
    %1497 = vmatprep.subr.bf16.mxu0 0
    %1498 = vmatpush1.bf16.msra.mxu0 0
    %1499 = vmatprep.subr.bf16.mxu0 0
    %1500 = vmatpush1.bf16.msra.mxu0 0
    %1501 = vmatprep.subr.bf16.mxu0 0
    %1502 = vmatpush1.bf16.msra.mxu0 0
    %1503 = vmatprep.subr.bf16.mxu0 0
    %1504 = vmatpush1.bf16.msra.mxu0 %v1056
    %1505 = vmatprep.subr.bf16.mxu0 0
    %1506 = vmatpush1.bf16.msra.mxu0 %v1055
    %1507 = vmatprep.subr.bf16.mxu0 0
    %1508 = vmatpush2.bf16.msra.mxu0 0
    %1509 = vmatprep.subr.bf16.mxu0 0
    %1510 = vmatpush2.bf16.msra.mxu0 0
    %1511 = vmatprep.subr.bf16.mxu0 0
    %1512 = vmatpush2.bf16.msra.mxu0 0
    %1513 = vmatprep.subr.bf16.mxu0 0
    %1514 = vmatpush2.bf16.msra.mxu0 0
    %1515 = vmatprep.subr.bf16.mxu0 0
    %1516 = vmatpush2.bf16.msra.mxu0 0
    %1517 = vmatprep.subr.bf16.mxu0 0
    %1518 = vmatpush2.bf16.msra.mxu0 0
    %1519 = vmatprep.subr.bf16.mxu0 0
    %1520 = vmatpush2.bf16.msra.mxu0 0
    %1521 = vmatprep.subr.bf16.mxu0 0
    %1522 = vmatpush2.bf16.msra.mxu0 0
    %1523 = vmatprep.mubr.bf16.mxu0 0
    %1524 = vmatmul.mubr.bf16.gmra.mxu0 %v1489
    %v1525 = vpop.f32.mrf.mxu0
    %v1526 = vadd.f32 0.0, %v1525
    %v1527 = vpop.f32.mrf.mxu0
    %v1528 = vpop.f32.mrf.mxu0
    %v1529 = vpop.f32.mrf.mxu0
    %1530 = vdwg.mxu0
    %v1531 = vadd.f32 %v1037, %v1526
    %v1532 = vxor.u32 %v1531, 2147483648
    %v1533 = vmul.f32 %v1532, 1.442695
    %v1534 = vpow.pop %v1533
    %v1535 = vadd.f32 %v1534, 1.0
    %v1536 = vrcp.pop %v1535
    %v1537 = vmul.f32 1.0, %v1536
    %v1538 = vtanh.pop %v1531
    %v1539 = vmul.f32 %v1537, %v1477
    %1541 = vrot.lane.b32.xlu0 %v1538, 64
    %v1542 = vpop.permute.xlu0 %1541
    %v1544 = vmul.f32 %v1537, %v1542
    %1546 = vrot.lane.b32.xlu0 %v1544, 32
    %v1547 = vpop.permute.xlu0 %1546
    %v1549 = vadd.f32 %v1539, %v1547
    %v1550 = vtanh.pop %v1549
    %1552 = vrot.lane.b32.xlu0 %v1550, 64
    %v1553 = vpop.permute.xlu0 %1552
    %v1555 = vmul.f32 %v1537, %v1553
    %v1556 = vpack.c.bf16 %v1555, %v1555
    %1558 = vrot.lane.b32.xlu0 %v1556, 32
    %v1559 = vpop.permute.xlu0 %1558
    %v1561 = vsel %vm261, %v1559, 0
    %1563 = vmatprep.subr.bf16.mxu0 0
    %1564 = vmatpush1.bf16.msra.mxu0 0
    %1565 = vmatprep.subr.bf16.mxu0 0
    %1566 = vmatpush1.bf16.msra.mxu0 0
    %1567 = vmatprep.subr.bf16.mxu0 0
    %1568 = vmatpush1.bf16.msra.mxu0 0
    %1569 = vmatprep.subr.bf16.mxu0 0
    %1570 = vmatpush1.bf16.msra.mxu0 0
    %1571 = vmatprep.subr.bf16.mxu0 0
    %1572 = vmatpush1.bf16.msra.mxu0 0
    %1573 = vmatprep.subr.bf16.mxu0 0
    %1574 = vmatpush1.bf16.msra.mxu0 0
    %1575 = vmatprep.subr.bf16.mxu0 0
    %1576 = vmatpush1.bf16.msra.mxu0 %v1056
    %1577 = vmatprep.subr.bf16.mxu0 0
    %1578 = vmatpush1.bf16.msra.mxu0 %v1055
    %1579 = vmatprep.subr.bf16.mxu0 0
    %1580 = vmatpush2.bf16.msra.mxu0 0
    %1581 = vmatprep.subr.bf16.mxu0 0
    %1582 = vmatpush2.bf16.msra.mxu0 0
    %1583 = vmatprep.subr.bf16.mxu0 0
    %1584 = vmatpush2.bf16.msra.mxu0 0
    %1585 = vmatprep.subr.bf16.mxu0 0
    %1586 = vmatpush2.bf16.msra.mxu0 0
    %1587 = vmatprep.subr.bf16.mxu0 0
    %1588 = vmatpush2.bf16.msra.mxu0 0
    %1589 = vmatprep.subr.bf16.mxu0 0
    %1590 = vmatpush2.bf16.msra.mxu0 0
    %1591 = vmatprep.subr.bf16.mxu0 0
    %1592 = vmatpush2.bf16.msra.mxu0 0
    %1593 = vmatprep.subr.bf16.mxu0 0
    %1594 = vmatpush2.bf16.msra.mxu0 0
    %1595 = vmatprep.mubr.bf16.mxu0 0
    %1596 = vmatmul.mubr.bf16.gmra.mxu0 %v1561
    %v1597 = vpop.f32.mrf.mxu0
    %v1598 = vadd.f32 0.0, %v1597
    %v1599 = vpop.f32.mrf.mxu0
    %v1600 = vpop.f32.mrf.mxu0
    %v1601 = vpop.f32.mrf.mxu0
    %1602 = vdwg.mxu0
    %v1603 = vadd.f32 %v1040, %v1598
    %v1604 = vxor.u32 %v1603, 2147483648
    %v1605 = vmul.f32 %v1604, 1.442695
    %v1606 = vpow.pop %v1605
    %v1607 = vadd.f32 %v1606, 1.0
    %v1608 = vrcp.pop %v1607
    %v1609 = vmul.f32 1.0, %v1608
    %v1610 = vtanh.pop %v1603
    %v1611 = vmul.f32 %v1609, %v1549
    %1613 = vrot.lane.b32.xlu0 %v1610, 64
    %v1614 = vpop.permute.xlu0 %1613
    %v1616 = vmul.f32 %v1609, %v1614
    %1618 = vrot.lane.b32.xlu0 %v1616, 32
    %v1619 = vpop.permute.xlu0 %1618
    %v1621 = vadd.f32 %v1611, %v1619
    %v1622 = vtanh.pop %v1621
    %1624 = vrot.lane.b32.xlu0 %v1622, 64
    %v1625 = vpop.permute.xlu0 %1624
    %v1627 = vmul.f32 %v1609, %v1625
    %v1628 = vpack.c.bf16 %v1627, %v1627
    %v1629 = vld [vmem:[%s8] sm:$0xf]
    %v1630 = vld [vmem:[%s8 + $0x4] sm:$0xf]
    %v1631 = vld [vmem:[%s8 + $0x8] sm:$0xf]
    %v1632 = vld [vmem:[%s8 + $0xc] sm:$0xf]
    %v1633 = vld [vmem:[%s9] sm:$0x1]
    %v1635 = vlaneseq
    %v1636 = vshrl.u32 %v1635, 7
    %v1637 = vsub.s32 0, %v1636
    %v1638 = vrot.slane %v1633, %v1637
    %1641 = vrot.lane.b32.xlu0 %v1628, 32
    %v1642 = vpop.permute.xlu0 %1641
    %v1647 = vunpack.c.l.b16 %v1629
    %v1648 = vunpack.c.l.b16 %v1630
    %v1649 = vunpack.c.l.b16 %v1631
    %v1650 = vunpack.c.l.b16 %v1632
    %v1651 = vpack.c.b16 %v1648, %v1647
    %v1652 = vpack.c.b16 %v1650, %v1649
    %v1656 = vsel %vm261, %v1642, 0
    %1658 = vmatprep.subr.bf16.mxu0 0
    %1659 = vmatpush1.bf16.msra.mxu0 0
    %1660 = vmatprep.subr.bf16.mxu0 0
    %1661 = vmatpush1.bf16.msra.mxu0 0
    %1662 = vmatprep.subr.bf16.mxu0 0
    %1663 = vmatpush1.bf16.msra.mxu0 0
    %1664 = vmatprep.subr.bf16.mxu0 0
    %1665 = vmatpush1.bf16.msra.mxu0 0
    %1666 = vmatprep.subr.bf16.mxu0 0
    %1667 = vmatpush1.bf16.msra.mxu0 0
    %1668 = vmatprep.subr.bf16.mxu0 0
    %1669 = vmatpush1.bf16.msra.mxu0 0
    %1670 = vmatprep.subr.bf16.mxu0 0
    %1671 = vmatpush1.bf16.msra.mxu0 %v1652
    %1672 = vmatprep.subr.bf16.mxu0 0
    %1673 = vmatpush1.bf16.msra.mxu0 %v1651
    %1674 = vmatprep.subr.bf16.mxu0 0
    %1675 = vmatpush2.bf16.msra.mxu0 0
    %1676 = vmatprep.subr.bf16.mxu0 0
    %1677 = vmatpush2.bf16.msra.mxu0 0
    %1678 = vmatprep.subr.bf16.mxu0 0
    %1679 = vmatpush2.bf16.msra.mxu0 0
    %1680 = vmatprep.subr.bf16.mxu0 0
    %1681 = vmatpush2.bf16.msra.mxu0 0
    %1682 = vmatprep.subr.bf16.mxu0 0
    %1683 = vmatpush2.bf16.msra.mxu0 0
    %1684 = vmatprep.subr.bf16.mxu0 0
    %1685 = vmatpush2.bf16.msra.mxu0 0
    %1686 = vmatprep.subr.bf16.mxu0 0
    %1687 = vmatpush2.bf16.msra.mxu0 0
    %1688 = vmatprep.subr.bf16.mxu0 0
    %1689 = vmatpush2.bf16.msra.mxu0 0
    %1690 = vmatprep.mubr.bf16.mxu0 0
    %1691 = vmatmul.mubr.bf16.gmra.mxu0 %v1656
    %v1692 = vpop.f32.mrf.mxu0
    %v1693 = vadd.f32 %v1638, %v1692
    %v1694 = vpop.f32.mrf.mxu0
    %v1695 = vpop.f32.mrf.mxu0
    %v1696 = vpop.f32.mrf.mxu0
    %1697 = vdwg.mxu0
    %v1698 = vmax.f32 %v1693, 0.0
    %v1699 = vpack.c.bf16 %v1698, %v1698
    %v1700 = vld [vmem:[%s10] sm:$0xf]
    %v1701 = vld [vmem:[%s10 + $0x4] sm:$0xf]
    %v1702 = vld [vmem:[%s10 + $0x8] sm:$0xf]
    %v1703 = vld [vmem:[%s10 + $0xc] sm:$0xf]
    %v1704 = vld [vmem:[%s10 + $0x10] sm:$0xf]
    %v1705 = vld [vmem:[%s10 + $0x14] sm:$0xf]
    %v1706 = vld [vmem:[%s10 + $0x18] sm:$0xf]
    %v1707 = vld [vmem:[%s10 + $0x1c] sm:$0xf]
    %v1708 = vld [vmem:[%s11] sm:$0x1]
    %v1710 = vlaneseq
    %v1711 = vshrl.u32 %v1710, 7
    %v1712 = vsub.s32 0, %v1711
    %v1713 = vrot.slane %v1708, %v1712
    %v1723 = vunpack.c.l.b16 %v1700
    %v1724 = vunpack.c.l.b16 %v1701
    %v1725 = vunpack.c.l.b16 %v1702
    %v1726 = vunpack.c.l.b16 %v1703
    %v1727 = vunpack.c.l.b16 %v1704
    %v1728 = vunpack.c.l.b16 %v1705
    %v1729 = vunpack.c.l.b16 %v1706
    %v1730 = vunpack.c.l.b16 %v1707
    %v1731 = vpack.c.b16 %v1724, %v1723
    %v1732 = vpack.c.b16 %v1726, %v1725
    %v1733 = vpack.c.b16 %v1728, %v1727
    %v1734 = vpack.c.b16 %v1730, %v1729
    %vm1739 = vcmask 523264
    %v1741 = vsel %vm1739, %v1699, 0
    %1743 = vmatprep.subr.bf16.mxu0 0
    %1744 = vmatpush1.bf16.msra.mxu0 0
    %1745 = vmatprep.subr.bf16.mxu0 0
    %1746 = vmatpush1.bf16.msra.mxu0 0
    %1747 = vmatprep.subr.bf16.mxu0 0
    %1748 = vmatpush1.bf16.msra.mxu0 0
    %1749 = vmatprep.subr.bf16.mxu0 0
    %1750 = vmatpush1.bf16.msra.mxu0 0
    %1751 = vmatprep.subr.bf16.mxu0 0
    %1752 = vmatpush1.bf16.msra.mxu0 %v1734
    %1753 = vmatprep.subr.bf16.mxu0 0
    %1754 = vmatpush1.bf16.msra.mxu0 %v1733
    %1755 = vmatprep.subr.bf16.mxu0 0
    %1756 = vmatpush1.bf16.msra.mxu0 %v1732
    %1757 = vmatprep.subr.bf16.mxu0 0
    %1758 = vmatpush1.bf16.msra.mxu0 %v1731
    %1759 = vmatprep.subr.bf16.mxu0 0
    %1760 = vmatpush2.bf16.msra.mxu0 0
    %1761 = vmatprep.subr.bf16.mxu0 0
    %1762 = vmatpush2.bf16.msra.mxu0 0
    %1763 = vmatprep.subr.bf16.mxu0 0
    %1764 = vmatpush2.bf16.msra.mxu0 0
    %1765 = vmatprep.subr.bf16.mxu0 0
    %1766 = vmatpush2.bf16.msra.mxu0 0
    %1767 = vmatprep.subr.bf16.mxu0 0
    %1768 = vmatpush2.bf16.msra.mxu0 0
    %1769 = vmatprep.subr.bf16.mxu0 0
    %1770 = vmatpush2.bf16.msra.mxu0 0
    %1771 = vmatprep.subr.bf16.mxu0 0
    %1772 = vmatpush2.bf16.msra.mxu0 0
    %1773 = vmatprep.subr.bf16.mxu0 0
    %1774 = vmatpush2.bf16.msra.mxu0 0
    %1775 = vmatprep.mubr.bf16.mxu0 0
    %1776 = vmatmul.mubr.bf16.gmra.mxu0 %v1741
    %v1777 = vpop.f32.mrf.mxu0
    %v1778 = vadd.f32 %v1713, %v1777
    %v1779 = vpop.f32.mrf.mxu0
    %v1780 = vpop.f32.mrf.mxu0
    %v1781 = vpop.f32.mrf.mxu0
    %1782 = vdwg.mxu0
    %vm1783 = vcmask 58368
    %1784 = vst.msk [vmem:[#allocation2] sm:$0x3] %vm1783, %v1778
    // Predicated region
    $region50: #{rnn_forward.1} parent=1 // pred_check
      _
    $region51: #{rnn_forward.1} parent=1 // pred_check_branch
      %1786 = sbr.rel (0) target = $region53
    $region52: #{rnn_forward.1} parent=1 // pred_region
      %s1788 = ssub.s32 32, 32
      %1789 = vsyncadd [#allocation3], %s1788
      %s1791 = sshll.u32 [#allocation2], 4
      %s1792 = int_to_ptr.vmem [resolvable:$true] %s1791
      %1794 = dma.vmem_to_hbm [thread:$0]  %s1792, 32, %s12, [#allocation3]
    $region53: #{rnn_forward.1} parent=1 // pred_fallthru
      _
    // Predicated region
    $region54: #{rnn_forward.1} parent=1 // pred_check
      _
    $region55: #{rnn_forward.1} parent=1 // pred_check_branch
      %1796 = sbr.rel (0) target = $region57
    $region56: #{rnn_forward.1} parent=1 // pred_region
      %1797 = dma.done [#allocation3], 32
    $region57: #{rnn_forward.1} parent=1 // pred_fallthru
      _
    %1798 = vsyncpa [#allocation3], 1

</llo_original>
